<compile_context>
chip_gen: v7x
topology: tpu7x:2x2x1
jax: 0.10.0
libtpu: 0.0.40
codegen_flags: <defaults>
</compile_context>

<pallas_src>
import functools

import jax
import jax.numpy as jnp
import numpy as np
from jax.experimental import pallas as pl
from jax.experimental.pallas import tpu as pltpu


# ----------------------------------------------------------------------------
# Pallas kernel: conv1 -> bn1 -> relu -> conv2 -> bn2 -> +residual -> relu
# ----------------------------------------------------------------------------
def _basic_block_kernel(x_ref, w1_ref, b1_ref, w2_ref, b2_ref, o_ref, *, C):
    """Fused depthwise BasicBlock forward on one lane-dense (Nb, H, W*C) tile.

    x_ref  : (Nb, H, W*C)  unpadded input, (W, C) flattened on the lane axis
    w*_ref : (9, W*C)      depthwise taps * folded BN scale, W-boundary-masked
    b*_ref : (1, W*C)      folded BN shift
    o_ref  : (Nb, H, W*C)
    """
    Nb, H, WC = o_ref.shape
    R = Nb * H  # rows of the 2-D (row, lane) view; reshape is a layout no-op
                # because H % 8 == 0 and WC % 128 == 0.

    x = x_ref[...]

    # Row-validity masks for the H (sublane) shifts: conv's zero padding in H
    # is realised by masking the wrapped-in rows of the roll (those are exactly
    # the first/last row of each image, including cross-image wrap).
    ridx = jax.lax.broadcasted_iota(jnp.int32, (Nb, H, WC), 1)
    not_top = ridx > 0          # a row h-1 exists
    not_bot = ridx < (H - 1)    # a row h+1 exists

    def shift_rows(src, dh):
        # src[h + dh] with zeros at image borders: one sublane roll (XLU) +
        # one VPU select.  Positive shifts only (R-1 == -1 mod R).
        shift = 1 if dh == -1 else R - 1
        rolled = pltpu.roll(src.reshape(R, WC), shift, axis=0).reshape(Nb, H, WC)
        return jnp.where(not_top if dh == -1 else not_bot, rolled, 0.0)

    def dwconv3x3(src, w_ref):
        # Depthwise 3x3.  W-axis zero padding is folded into the taps
        # host-side (kw=0 / kw=2 taps are zero on the w==0 / w==W-1 lanes), so
        # the lane rolls need no masking.  Taps are read one (W*C,) row per
        # use -- never hoisted as a full (9, W*C) value.
        acc = None
        for kh in range(3):
            dh = kh - 1
            r = src if dh == 0 else shift_rows(src, dh)
            r2 = r.reshape(R, WC)
            left = pltpu.roll(r2, C, axis=1).reshape(Nb, H, WC)       # x[w-1]
            right = pltpu.roll(r2, WC - C, axis=1).reshape(Nb, H, WC)  # x[w+1]
            term = (left * w_ref[3 * kh + 0]
                    + r * w_ref[3 * kh + 1]
                    + right * w_ref[3 * kh + 2])
            acc = term if acc is None else acc + term
        return acc

    # conv1 (BN1 scale folded into taps) + shift + relu
    out1 = jnp.maximum(dwconv3x3(x, w1_ref) + b1_ref[...], 0.0)
    # conv2 (BN2 scale folded into taps) + shift + residual + relu
    out2 = dwconv3x3(out1, w2_ref) + b2_ref[...]
    o_ref[...] = jnp.maximum(out2 + x, 0.0).astype(o_ref.dtype)


# ----------------------------------------------------------------------------
# Host-side parameter folding
# ----------------------------------------------------------------------------
def _fold_depthwise_taps(w, gamma, var, eps, W, dtype):
    """torch (C,1,3,3) depthwise weights * folded BN scale -> (9, W*C) taps.

    The conv's zero padding along W is folded in by zeroing the kw=0 taps on
    w==0 lanes and the kw=2 taps on w==W-1 lanes, so lane-roll wrap-around
    contributes nothing at zero extra VPU cost.
    """
    C = w.shape[0]
    scale = gamma / jnp.sqrt(var + eps)                                   # (C,)
    taps = jnp.transpose(w[:, 0, :, :], (1, 2, 0)).reshape(9, C) * scale[None, :]
    taps = jnp.tile(taps, (1, W))                                         # (9, W*C), lane = w*C + c
    wpos = jnp.arange(W * C) // C
    left_ok = (wpos >= 1).astype(taps.dtype)       # w-1 neighbour exists
    right_ok = (wpos <= W - 2).astype(taps.dtype)  # w+1 neighbour exists
    taps = taps.at[jnp.array([0, 3, 6])].multiply(left_ok[None, :])
    taps = taps.at[jnp.array([2, 5, 8])].multiply(right_ok[None, :])
    return taps.astype(dtype)


def _fold_bn_shift(gamma, beta, mean, var, eps, W, dtype):
    scale = gamma / jnp.sqrt(var + eps)
    shift = beta - mean * scale
    return jnp.tile(shift, W).reshape(1, -1).astype(dtype)


def _pick_block_samples(N, per_sample_bytes, target_bytes=1 << 20):
    """Largest divisor of N whose block stays under ~1 MiB (>=1)."""
    nb = 1
    for d in range(1, N + 1):
        if N % d == 0 and d * per_sample_bytes <= target_bytes:
            nb = d
    return nb


# ----------------------------------------------------------------------------
# Wrapper: NCHW in / NCHW out (matches PyTorch), kernel runs lane-dense NHWC
# ----------------------------------------------------------------------------
@functools.partial(jax.jit,
                   static_argnames=("groups", "eps", "block_samples",
                                    "compute_dtype"))
def basic_block_forward(x_nchw, w1, g1, b1, m1, v1, w2, g2, b2, m2, v2,
                        groups=32, eps=1e-5, block_samples=None,
                        compute_dtype=jnp.float32):
    N, Cin, H, W = x_nchw.shape
    Cmid = w1.shape[0]
    # Residual add (downsample=None) needs Cin == Cmid; this kernel path also
    # requires the convs to be depthwise (groups == channels).
    assert Cin == Cmid == groups, (
        "this kernel supports the depthwise BasicBlock config "
        "(inplanes == planes*2 == groups)")
    assert w1.shape == (Cmid, Cin // groups, 3, 3)
    assert w2.shape == (Cmid, Cmid // groups, 3, 3)

    C = Cin
    WC = W * C
    assert WC % 128 == 0, "W*C must be a multiple of 128 (lane-dense layout)"
    assert H % 8 == 0, "H must be a multiple of 8 (sublane-dense layout)"

    itemsize = jnp.dtype(compute_dtype).itemsize
    nb = block_samples if block_samples is not None else _pick_block_samples(
        N, H * WC * itemsize)
    assert N % nb == 0

    # NCHW -> lane-dense (N, H, W*C).  Padding is handled inside the kernel
    # (H borders via masked sublane rolls, W borders via zeroed boundary
    # taps), so there is no host-side jnp.pad round trip of the activation.
    x = jnp.transpose(x_nchw, (0, 2, 3, 1)).reshape(N, H, WC).astype(compute_dtype)

    w1t = _fold_depthwise_taps(w1, g1, v1, eps, W, compute_dtype)
    w2t = _fold_depthwise_taps(w2, g2, v2, eps, W, compute_dtype)
    b1s = _fold_bn_shift(g1, b1, m1, v1, eps, W, compute_dtype)
    b2s = _fold_bn_shift(g2, b2, m2, v2, eps, W, compute_dtype)

    # VMEM budget: double-buffered in/out blocks + constants, capped at 48 MiB
    # so the same tiling also fits v7x (64 MiB physical VMEM).
    block_bytes = nb * H * WC * itemsize
    const_bytes = 2 * (9 + 1) * WC * itemsize
    vmem_limit = int(min(48 << 20, max(8 << 20, 6 * block_bytes + 4 * const_bytes)))

    out = pl.pallas_call(
        functools.partial(_basic_block_kernel, C=C),
        out_shape=jax.ShapeDtypeStruct((N, H, WC), compute_dtype),
        grid=(N // nb,),
        in_specs=[
            pl.BlockSpec((nb, H, WC), lambda i: (i, 0, 0)),   # activations
            pl.BlockSpec((9, WC), lambda i: (0, 0)),          # conv1 taps (BN1 folded)
            pl.BlockSpec((1, WC), lambda i: (0, 0)),          # bn1 shift
            pl.BlockSpec((9, WC), lambda i: (0, 0)),          # conv2 taps (BN2 folded)
            pl.BlockSpec((1, WC), lambda i: (0, 0)),          # bn2 shift
        ],
        out_specs=pl.BlockSpec((nb, H, WC), lambda i: (i, 0, 0)),
        compiler_params=pltpu.CompilerParams(
            dimension_semantics=("parallel",),
            vmem_limit_bytes=vmem_limit),
        cost_estimate=pl.CostEstimate(
            flops=N * H * WC * 44,          # 2 depthwise convs + epilogue
            transcendentals=0,
            bytes_accessed=2 * N * H * WC * itemsize + 4 * const_bytes),
    )(x, w1t, b1s, w2t, b2s)

    out = out.reshape(N, H, W, C).transpose(0, 3, 1, 2)     # back to NCHW
    return out.astype(x_nchw.dtype)


# ----------------------------------------------------------------------------
# Pure-JAX reference (lax.conv with feature_group_count) for verification
# ----------------------------------------------------------------------------
def reference_forward(x_nchw, w1, g1, b1, m1, v1, w2, g2, b2, m2, v2,
                      groups=32, eps=1e-5):
    x = jnp.transpose(x_nchw, (0, 2, 3, 1)).astype(jnp.float32)

    def conv(inp, w):
        w_hwio = jnp.transpose(w, (2, 3, 1, 0))  # (3,3,Cin//G,Cout)
        return jax.lax.conv_general_dilated(
            inp, w_hwio, (1, 1), ((1, 1), (1, 1)),
            dimension_numbers=("NHWC", "HWIO", "NHWC"),
            feature_group_count=groups)

    def bn(inp, g, b, m, v):
        return (inp - m) / jnp.sqrt(v + eps) * g + b

    out = jax.nn.relu(bn(conv(x, w1), g1, b1, m1, v1))
    out = bn(conv(out, w2), g2, b2, m2, v2)
    out = jax.nn.relu(out + x)
    return jnp.transpose(out, (0, 3, 1, 2))


# ----------------------------------------------------------------------------
if __name__ == "__main__":
    # BasicBlock(inplanes=32, planes=16): conv1 groups=32 (conv3x3 default),
    # conv2 groups=num_group=32.  Residual add requires planes*2 == inplanes.
    inplanes, planes, groups = 32, 16, 32
    cmid = planes * 2                      # 32
    N, H, W = 2, 16, 16

    key = jax.random.PRNGKey(0)
    ks = jax.random.split(key, 11)

    x = jax.random.normal(ks[0], (N, inplanes, H, W), jnp.float32)

    # conv weights in torch layout: (Cout, Cin//groups, 3, 3)
    fan1 = (inplanes // groups) * 9
    w1 = jax.random.normal(ks[1], (cmid, inplanes // groups, 3, 3),
                           jnp.float32) * (2.0 / fan1) ** 0.5
    fan2 = (cmid // groups) * 9
    w2 = jax.random.normal(ks[2], (cmid, cmid // groups, 3, 3),
                           jnp.float32) * (2.0 / fan2) ** 0.5

    # BatchNorm params (inference mode, deterministic)
    g1 = 1.0 + 0.1 * jax.random.normal(ks[3], (cmid,), jnp.float32)
    b1 = 0.1 * jax.random.normal(ks[4], (cmid,), jnp.float32)
    m1 = 0.1 * jax.random.normal(ks[5], (cmid,), jnp.float32)
    v1 = jnp.abs(jax.random.normal(ks[6], (cmid,), jnp.float32)) + 0.5
    g2 = 1.0 + 0.1 * jax.random.normal(ks[7], (cmid,), jnp.float32)
    b2 = 0.1 * jax.random.normal(ks[8], (cmid,), jnp.float32)
    m2 = 0.1 * jax.random.normal(ks[9], (cmid,), jnp.float32)
    v2 = jnp.abs(jax.random.normal(ks[10], (cmid,), jnp.float32)) + 0.5

    out = basic_block_forward(x, w1, g1, b1, m1, v1, w2, g2, b2, m2, v2,
                              groups=groups)
    out = jax.block_until_ready(out)

    ref = reference_forward(x, w1, g1, b1, m1, v1, w2, g2, b2, m2, v2,
                            groups=groups)
    ref = jax.block_until_ready(ref)

    np.testing.assert_allclose(np.asarray(out), np.asarray(ref),
                               rtol=1e-4, atol=1e-4)
    print("KERNEL_OK")
</pallas_src>

<mosaic_0001>
module attributes {stable_mosaic.version = 11 : i64} {
  func.func @_basic_block_kernel(%arg0: i32, %arg1: memref<2x16x512xf32, #tpu.memory_space<vmem>>, %arg2: memref<9x512xf32, #tpu.memory_space<vmem>>, %arg3: memref<1x512xf32, #tpu.memory_space<vmem>>, %arg4: memref<9x512xf32, #tpu.memory_space<vmem>>, %arg5: memref<1x512xf32, #tpu.memory_space<vmem>>, %arg6: memref<2x16x512xf32, #tpu.memory_space<vmem>>) attributes {dimension_semantics = [#tpu.dimension_semantics<parallel>], iteration_bounds = array<i64: 1>, scalar_prefetch = 0 : i64, scratch_operands = 0 : i64, tpu.core_type = #tpu.core_type<tc>, window_params = [{transform_indices = @transform_0, window_bounds = array<i64: 2, 16, 512>}, {pipeline_mode = #tpu.pipeline_mode<synchronous>, transform_indices = @transform_1, window_bounds = array<i64: 9, 512>}, {pipeline_mode = #tpu.pipeline_mode<synchronous>, transform_indices = @transform_2, window_bounds = array<i64: 1, 512>}, {pipeline_mode = #tpu.pipeline_mode<synchronous>, transform_indices = @transform_3, window_bounds = array<i64: 9, 512>}, {pipeline_mode = #tpu.pipeline_mode<synchronous>, transform_indices = @transform_4, window_bounds = array<i64: 1, 512>}, {transform_indices = @transform_5, window_bounds = array<i64: 2, 16, 512>}]} {
    %c0 = arith.constant 0 : index
    %c0_0 = arith.constant 0 : index
    %c0_1 = arith.constant 0 : index
    %0 = vector.load %arg1[%c0, %c0_0, %c0_1] : memref<2x16x512xf32, #tpu.memory_space<vmem>>, vector<2x16x512xf32>
    %1 = tpu.iota {dimensions = array<i32: 1>} : vector<2x16x512xi32>
    %c0_i32 = arith.constant 0 : i32
    %2 = vector.broadcast %c0_i32 : i32 to vector<2x16x512xi32>
    %3 = arith.cmpi sgt, %1, %2 : vector<2x16x512xi32>
    %c15_i32 = arith.constant 15 : i32
    %4 = vector.broadcast %c15_i32 : i32 to vector<2x16x512xi32>
    %5 = arith.cmpi slt, %1, %4 : vector<2x16x512xi32>
    %6 = vector.shape_cast %0 : vector<2x16x512xf32> to vector<32x512xf32>
    %c1_i32 = arith.constant 1 : i32
    %7 = tpu.dynamic_rotate %6 by %c1_i32 dim 0 : vector<32x512xf32>, i32 -> vector<32x512xf32>
    %8 = vector.shape_cast %7 : vector<32x512xf32> to vector<2x16x512xf32>
    %cst = arith.constant 0.000000e+00 : f32
    %9 = vector.broadcast %cst : f32 to vector<2x16x512xf32>
    %10 = arith.select %3, %8, %9 : vector<2x16x512xi1>, vector<2x16x512xf32>
    %11 = vector.shape_cast %10 : vector<2x16x512xf32> to vector<32x512xf32>
    %c32_i32 = arith.constant 32 : i32
    %12 = tpu.dynamic_rotate %11 by %c32_i32 dim 1 : vector<32x512xf32>, i32 -> vector<32x512xf32>
    %13 = vector.shape_cast %12 : vector<32x512xf32> to vector<2x16x512xf32>
    %c480_i32 = arith.constant 480 : i32
    %14 = tpu.dynamic_rotate %11 by %c480_i32 dim 1 : vector<32x512xf32>, i32 -> vector<32x512xf32>
    %15 = vector.shape_cast %14 : vector<32x512xf32> to vector<2x16x512xf32>
    %c0_2 = arith.constant 0 : index
    %c0_3 = arith.constant 0 : index
    %16 = vector.load %arg2[%c0_2, %c0_3] : memref<9x512xf32, #tpu.memory_space<vmem>>, vector<1x512xf32>
    %17 = vector.shape_cast %16 : vector<1x512xf32> to vector<512xf32>
    %18 = vector.shape_cast %17 : vector<512xf32> to vector<1x1x512xf32>
    %19 = vector.broadcast %18 : vector<1x1x512xf32> to vector<2x16x512xf32>
    %20 = arith.mulf %13, %19 : vector<2x16x512xf32>
    %c1 = arith.constant 1 : index
    %c0_4 = arith.constant 0 : index
    %21 = vector.load %arg2[%c1, %c0_4] : memref<9x512xf32, #tpu.memory_space<vmem>>, vector<1x512xf32>
    %22 = vector.shape_cast %21 : vector<1x512xf32> to vector<512xf32>
    %23 = vector.shape_cast %22 : vector<512xf32> to vector<1x1x512xf32>
    %24 = vector.broadcast %23 : vector<1x1x512xf32> to vector<2x16x512xf32>
    %25 = arith.mulf %10, %24 : vector<2x16x512xf32>
    %26 = arith.addf %20, %25 : vector<2x16x512xf32>
    %c2 = arith.constant 2 : index
    %c0_5 = arith.constant 0 : index
    %27 = vector.load %arg2[%c2, %c0_5] : memref<9x512xf32, #tpu.memory_space<vmem>>, vector<1x512xf32>
    %28 = vector.shape_cast %27 : vector<1x512xf32> to vector<512xf32>
    %29 = vector.shape_cast %28 : vector<512xf32> to vector<1x1x512xf32>
    %30 = vector.broadcast %29 : vector<1x1x512xf32> to vector<2x16x512xf32>
    %31 = arith.mulf %15, %30 : vector<2x16x512xf32>
    %32 = arith.addf %26, %31 : vector<2x16x512xf32>
    %33 = vector.shape_cast %0 : vector<2x16x512xf32> to vector<32x512xf32>
    %c32_i32_6 = arith.constant 32 : i32
    %34 = tpu.dynamic_rotate %33 by %c32_i32_6 dim 1 : vector<32x512xf32>, i32 -> vector<32x512xf32>
    %35 = vector.shape_cast %34 : vector<32x512xf32> to vector<2x16x512xf32>
    %c480_i32_7 = arith.constant 480 : i32
    %36 = tpu.dynamic_rotate %33 by %c480_i32_7 dim 1 : vector<32x512xf32>, i32 -> vector<32x512xf32>
    %37 = vector.shape_cast %36 : vector<32x512xf32> to vector<2x16x512xf32>
    %c3 = arith.constant 3 : index
    %c0_8 = arith.constant 0 : index
    %38 = vector.load %arg2[%c3, %c0_8] : memref<9x512xf32, #tpu.memory_space<vmem>>, vector<1x512xf32>
    %39 = vector.shape_cast %38 : vector<1x512xf32> to vector<512xf32>
    %40 = vector.shape_cast %39 : vector<512xf32> to vector<1x1x512xf32>
    %41 = vector.broadcast %40 : vector<1x1x512xf32> to vector<2x16x512xf32>
    %42 = arith.mulf %35, %41 : vector<2x16x512xf32>
    %c4 = arith.constant 4 : index
    %c0_9 = arith.constant 0 : index
    %43 = vector.load %arg2[%c4, %c0_9] : memref<9x512xf32, #tpu.memory_space<vmem>>, vector<1x512xf32>
    %44 = vector.shape_cast %43 : vector<1x512xf32> to vector<512xf32>
    %45 = vector.shape_cast %44 : vector<512xf32> to vector<1x1x512xf32>
    %46 = vector.broadcast %45 : vector<1x1x512xf32> to vector<2x16x512xf32>
    %47 = arith.mulf %0, %46 : vector<2x16x512xf32>
    %48 = arith.addf %42, %47 : vector<2x16x512xf32>
    %c5 = arith.constant 5 : index
    %c0_10 = arith.constant 0 : index
    %49 = vector.load %arg2[%c5, %c0_10] : memref<9x512xf32, #tpu.memory_space<vmem>>, vector<1x512xf32>
    %50 = vector.shape_cast %49 : vector<1x512xf32> to vector<512xf32>
    %51 = vector.shape_cast %50 : vector<512xf32> to vector<1x1x512xf32>
    %52 = vector.broadcast %51 : vector<1x1x512xf32> to vector<2x16x512xf32>
    %53 = arith.mulf %37, %52 : vector<2x16x512xf32>
    %54 = arith.addf %48, %53 : vector<2x16x512xf32>
    %55 = arith.addf %32, %54 : vector<2x16x512xf32>
    %56 = vector.shape_cast %0 : vector<2x16x512xf32> to vector<32x512xf32>
    %c31_i32 = arith.constant 31 : i32
    %57 = tpu.dynamic_rotate %56 by %c31_i32 dim 0 : vector<32x512xf32>, i32 -> vector<32x512xf32>
    %58 = vector.shape_cast %57 : vector<32x512xf32> to vector<2x16x512xf32>
    %cst_11 = arith.constant 0.000000e+00 : f32
    %59 = vector.broadcast %cst_11 : f32 to vector<2x16x512xf32>
    %60 = arith.select %5, %58, %59 : vector<2x16x512xi1>, vector<2x16x512xf32>
    %61 = vector.shape_cast %60 : vector<2x16x512xf32> to vector<32x512xf32>
    %c32_i32_12 = arith.constant 32 : i32
    %62 = tpu.dynamic_rotate %61 by %c32_i32_12 dim 1 : vector<32x512xf32>, i32 -> vector<32x512xf32>
    %63 = vector.shape_cast %62 : vector<32x512xf32> to vector<2x16x512xf32>
    %c480_i32_13 = arith.constant 480 : i32
    %64 = tpu.dynamic_rotate %61 by %c480_i32_13 dim 1 : vector<32x512xf32>, i32 -> vector<32x512xf32>
    %65 = vector.shape_cast %64 : vector<32x512xf32> to vector<2x16x512xf32>
    %c6 = arith.constant 6 : index
    %c0_14 = arith.constant 0 : index
    %66 = vector.load %arg2[%c6, %c0_14] : memref<9x512xf32, #tpu.memory_space<vmem>>, vector<1x512xf32>
    %67 = vector.shape_cast %66 : vector<1x512xf32> to vector<512xf32>
    %68 = vector.shape_cast %67 : vector<512xf32> to vector<1x1x512xf32>
    %69 = vector.broadcast %68 : vector<1x1x512xf32> to vector<2x16x512xf32>
    %70 = arith.mulf %63, %69 : vector<2x16x512xf32>
    %c7 = arith.constant 7 : index
    %c0_15 = arith.constant 0 : index
    %71 = vector.load %arg2[%c7, %c0_15] : memref<9x512xf32, #tpu.memory_space<vmem>>, vector<1x512xf32>
    %72 = vector.shape_cast %71 : vector<1x512xf32> to vector<512xf32>
    %73 = vector.shape_cast %72 : vector<512xf32> to vector<1x1x512xf32>
    %74 = vector.broadcast %73 : vector<1x1x512xf32> to vector<2x16x512xf32>
    %75 = arith.mulf %60, %74 : vector<2x16x512xf32>
    %76 = arith.addf %70, %75 : vector<2x16x512xf32>
    %c8 = arith.constant 8 : index
    %c0_16 = arith.constant 0 : index
    %77 = vector.load %arg2[%c8, %c0_16] : memref<9x512xf32, #tpu.memory_space<vmem>>, vector<1x512xf32>
    %78 = vector.shape_cast %77 : vector<1x512xf32> to vector<512xf32>
    %79 = vector.shape_cast %78 : vector<512xf32> to vector<1x1x512xf32>
    %80 = vector.broadcast %79 : vector<1x1x512xf32> to vector<2x16x512xf32>
    %81 = arith.mulf %65, %80 : vector<2x16x512xf32>
    %82 = arith.addf %76, %81 : vector<2x16x512xf32>
    %83 = arith.addf %55, %82 : vector<2x16x512xf32>
    %c0_17 = arith.constant 0 : index
    %c0_18 = arith.constant 0 : index
    %84 = vector.load %arg3[%c0_17, %c0_18] : memref<1x512xf32, #tpu.memory_space<vmem>>, vector<1x512xf32>
    %85 = vector.shape_cast %84 : vector<1x512xf32> to vector<1x1x512xf32>
    %86 = vector.broadcast %85 : vector<1x1x512xf32> to vector<2x16x512xf32>
    %87 = arith.addf %83, %86 : vector<2x16x512xf32>
    %cst_19 = arith.constant 0.000000e+00 : f32
    %88 = vector.broadcast %cst_19 : f32 to vector<2x16x512xf32>
    %89 = arith.maximumf %87, %88 : vector<2x16x512xf32>
    %90 = vector.shape_cast %89 : vector<2x16x512xf32> to vector<32x512xf32>
    %c1_i32_20 = arith.constant 1 : i32
    %91 = tpu.dynamic_rotate %90 by %c1_i32_20 dim 0 : vector<32x512xf32>, i32 -> vector<32x512xf32>
    %92 = vector.shape_cast %91 : vector<32x512xf32> to vector<2x16x512xf32>
    %cst_21 = arith.constant 0.000000e+00 : f32
    %93 = vector.broadcast %cst_21 : f32 to vector<2x16x512xf32>
    %94 = arith.select %3, %92, %93 : vector<2x16x512xi1>, vector<2x16x512xf32>
    %95 = vector.shape_cast %94 : vector<2x16x512xf32> to vector<32x512xf32>
    %c32_i32_22 = arith.constant 32 : i32
    %96 = tpu.dynamic_rotate %95 by %c32_i32_22 dim 1 : vector<32x512xf32>, i32 -> vector<32x512xf32>
    %97 = vector.shape_cast %96 : vector<32x512xf32> to vector<2x16x512xf32>
    %c480_i32_23 = arith.constant 480 : i32
    %98 = tpu.dynamic_rotate %95 by %c480_i32_23 dim 1 : vector<32x512xf32>, i32 -> vector<32x512xf32>
    %99 = vector.shape_cast %98 : vector<32x512xf32> to vector<2x16x512xf32>
    %c0_24 = arith.constant 0 : index
    %c0_25 = arith.constant 0 : index
    %100 = vector.load %arg4[%c0_24, %c0_25] : memref<9x512xf32, #tpu.memory_space<vmem>>, vector<1x512xf32>
    %101 = vector.shape_cast %100 : vector<1x512xf32> to vector<512xf32>
    %102 = vector.shape_cast %101 : vector<512xf32> to vector<1x1x512xf32>
    %103 = vector.broadcast %102 : vector<1x1x512xf32> to vector<2x16x512xf32>
    %104 = arith.mulf %97, %103 : vector<2x16x512xf32>
    %c1_26 = arith.constant 1 : index
    %c0_27 = arith.constant 0 : index
    %105 = vector.load %arg4[%c1_26, %c0_27] : memref<9x512xf32, #tpu.memory_space<vmem>>, vector<1x512xf32>
    %106 = vector.shape_cast %105 : vector<1x512xf32> to vector<512xf32>
    %107 = vector.shape_cast %106 : vector<512xf32> to vector<1x1x512xf32>
    %108 = vector.broadcast %107 : vector<1x1x512xf32> to vector<2x16x512xf32>
    %109 = arith.mulf %94, %108 : vector<2x16x512xf32>
    %110 = arith.addf %104, %109 : vector<2x16x512xf32>
    %c2_28 = arith.constant 2 : index
    %c0_29 = arith.constant 0 : index
    %111 = vector.load %arg4[%c2_28, %c0_29] : memref<9x512xf32, #tpu.memory_space<vmem>>, vector<1x512xf32>
    %112 = vector.shape_cast %111 : vector<1x512xf32> to vector<512xf32>
    %113 = vector.shape_cast %112 : vector<512xf32> to vector<1x1x512xf32>
    %114 = vector.broadcast %113 : vector<1x1x512xf32> to vector<2x16x512xf32>
    %115 = arith.mulf %99, %114 : vector<2x16x512xf32>
    %116 = arith.addf %110, %115 : vector<2x16x512xf32>
    %117 = vector.shape_cast %89 : vector<2x16x512xf32> to vector<32x512xf32>
    %c32_i32_30 = arith.constant 32 : i32
    %118 = tpu.dynamic_rotate %117 by %c32_i32_30 dim 1 : vector<32x512xf32>, i32 -> vector<32x512xf32>
    %119 = vector.shape_cast %118 : vector<32x512xf32> to vector<2x16x512xf32>
    %c480_i32_31 = arith.constant 480 : i32
    %120 = tpu.dynamic_rotate %117 by %c480_i32_31 dim 1 : vector<32x512xf32>, i32 -> vector<32x512xf32>
    %121 = vector.shape_cast %120 : vector<32x512xf32> to vector<2x16x512xf32>
    %c3_32 = arith.constant 3 : index
    %c0_33 = arith.constant 0 : index
    %122 = vector.load %arg4[%c3_32, %c0_33] : memref<9x512xf32, #tpu.memory_space<vmem>>, vector<1x512xf32>
    %123 = vector.shape_cast %122 : vector<1x512xf32> to vector<512xf32>
    %124 = vector.shape_cast %123 : vector<512xf32> to vector<1x1x512xf32>
    %125 = vector.broadcast %124 : vector<1x1x512xf32> to vector<2x16x512xf32>
    %126 = arith.mulf %119, %125 : vector<2x16x512xf32>
    %c4_34 = arith.constant 4 : index
    %c0_35 = arith.constant 0 : index
    %127 = vector.load %arg4[%c4_34, %c0_35] : memref<9x512xf32, #tpu.memory_space<vmem>>, vector<1x512xf32>
    %128 = vector.shape_cast %127 : vector<1x512xf32> to vector<512xf32>
    %129 = vector.shape_cast %128 : vector<512xf32> to vector<1x1x512xf32>
    %130 = vector.broadcast %129 : vector<1x1x512xf32> to vector<2x16x512xf32>
    %131 = arith.mulf %89, %130 : vector<2x16x512xf32>
    %132 = arith.addf %126, %131 : vector<2x16x512xf32>
    %c5_36 = arith.constant 5 : index
    %c0_37 = arith.constant 0 : index
    %133 = vector.load %arg4[%c5_36, %c0_37] : memref<9x512xf32, #tpu.memory_space<vmem>>, vector<1x512xf32>
    %134 = vector.shape_cast %133 : vector<1x512xf32> to vector<512xf32>
    %135 = vector.shape_cast %134 : vector<512xf32> to vector<1x1x512xf32>
    %136 = vector.broadcast %135 : vector<1x1x512xf32> to vector<2x16x512xf32>
    %137 = arith.mulf %121, %136 : vector<2x16x512xf32>
    %138 = arith.addf %132, %137 : vector<2x16x512xf32>
    %139 = arith.addf %116, %138 : vector<2x16x512xf32>
    %140 = vector.shape_cast %89 : vector<2x16x512xf32> to vector<32x512xf32>
    %c31_i32_38 = arith.constant 31 : i32
    %141 = tpu.dynamic_rotate %140 by %c31_i32_38 dim 0 : vector<32x512xf32>, i32 -> vector<32x512xf32>
    %142 = vector.shape_cast %141 : vector<32x512xf32> to vector<2x16x512xf32>
    %cst_39 = arith.constant 0.000000e+00 : f32
    %143 = vector.broadcast %cst_39 : f32 to vector<2x16x512xf32>
    %144 = arith.select %5, %142, %143 : vector<2x16x512xi1>, vector<2x16x512xf32>
    %145 = vector.shape_cast %144 : vector<2x16x512xf32> to vector<32x512xf32>
    %c32_i32_40 = arith.constant 32 : i32
    %146 = tpu.dynamic_rotate %145 by %c32_i32_40 dim 1 : vector<32x512xf32>, i32 -> vector<32x512xf32>
    %147 = vector.shape_cast %146 : vector<32x512xf32> to vector<2x16x512xf32>
    %c480_i32_41 = arith.constant 480 : i32
    %148 = tpu.dynamic_rotate %145 by %c480_i32_41 dim 1 : vector<32x512xf32>, i32 -> vector<32x512xf32>
    %149 = vector.shape_cast %148 : vector<32x512xf32> to vector<2x16x512xf32>
    %c6_42 = arith.constant 6 : index
    %c0_43 = arith.constant 0 : index
    %150 = vector.load %arg4[%c6_42, %c0_43] : memref<9x512xf32, #tpu.memory_space<vmem>>, vector<1x512xf32>
    %151 = vector.shape_cast %150 : vector<1x512xf32> to vector<512xf32>
    %152 = vector.shape_cast %151 : vector<512xf32> to vector<1x1x512xf32>
    %153 = vector.broadcast %152 : vector<1x1x512xf32> to vector<2x16x512xf32>
    %154 = arith.mulf %147, %153 : vector<2x16x512xf32>
    %c7_44 = arith.constant 7 : index
    %c0_45 = arith.constant 0 : index
    %155 = vector.load %arg4[%c7_44, %c0_45] : memref<9x512xf32, #tpu.memory_space<vmem>>, vector<1x512xf32>
    %156 = vector.shape_cast %155 : vector<1x512xf32> to vector<512xf32>
    %157 = vector.shape_cast %156 : vector<512xf32> to vector<1x1x512xf32>
    %158 = vector.broadcast %157 : vector<1x1x512xf32> to vector<2x16x512xf32>
    %159 = arith.mulf %144, %158 : vector<2x16x512xf32>
    %160 = arith.addf %154, %159 : vector<2x16x512xf32>
    %c8_46 = arith.constant 8 : index
    %c0_47 = arith.constant 0 : index
    %161 = vector.load %arg4[%c8_46, %c0_47] : memref<9x512xf32, #tpu.memory_space<vmem>>, vector<1x512xf32>
    %162 = vector.shape_cast %161 : vector<1x512xf32> to vector<512xf32>
    %163 = vector.shape_cast %162 : vector<512xf32> to vector<1x1x512xf32>
    %164 = vector.broadcast %163 : vector<1x1x512xf32> to vector<2x16x512xf32>
    %165 = arith.mulf %149, %164 : vector<2x16x512xf32>
    %166 = arith.addf %160, %165 : vector<2x16x512xf32>
    %167 = arith.addf %139, %166 : vector<2x16x512xf32>
    %c0_48 = arith.constant 0 : index
    %c0_49 = arith.constant 0 : index
    %168 = vector.load %arg5[%c0_48, %c0_49] : memref<1x512xf32, #tpu.memory_space<vmem>>, vector<1x512xf32>
    %169 = vector.shape_cast %168 : vector<1x512xf32> to vector<1x1x512xf32>
    %170 = vector.broadcast %169 : vector<1x1x512xf32> to vector<2x16x512xf32>
    %171 = arith.addf %167, %170 : vector<2x16x512xf32>
    %172 = arith.addf %171, %0 : vector<2x16x512xf32>
    %cst_50 = arith.constant 0.000000e+00 : f32
    %173 = vector.broadcast %cst_50 : f32 to vector<2x16x512xf32>
    %174 = arith.maximumf %172, %173 : vector<2x16x512xf32>
    %c0_51 = arith.constant 0 : index
    %c0_52 = arith.constant 0 : index
    %c0_53 = arith.constant 0 : index
    %175 = vector.load %arg6[%c0_51, %c0_52, %c0_53] : memref<2x16x512xf32, #tpu.memory_space<vmem>>, vector<2x16x512xf32>
    tpu.vector_store %arg6[%c0_51, %c0_52, %c0_53], %174 {strides = array<i32>} : memref<2x16x512xf32, #tpu.memory_space<vmem>>, vector<2x16x512xf32>,
    return
  }
  func.func @transform_0(%arg0: i32) -> (i32, i32, i32) {
    %c0_i32 = arith.constant 0 : i32
    %c0_i32_0 = arith.constant 0 : i32
    %c0_i32_1 = arith.constant 0 : i32
    return %arg0, %c0_i32, %c0_i32_0 : i32, i32, i32
  }
  func.func @transform_1(%arg0: i32) -> (i32, i32) {
    %c0_i32 = arith.constant 0 : i32
    %c0_i32_0 = arith.constant 0 : i32
    %c0_i32_1 = arith.constant 0 : i32
    return %c0_i32, %c0_i32_0 : i32, i32
  }
  func.func @transform_2(%arg0: i32) -> (i32, i32) {
    %c0_i32 = arith.constant 0 : i32
    %c0_i32_0 = arith.constant 0 : i32
    %c0_i32_1 = arith.constant 0 : i32
    return %c0_i32, %c0_i32_0 : i32, i32
  }
  func.func @transform_3(%arg0: i32) -> (i32, i32) {
    %c0_i32 = arith.constant 0 : i32
    %c0_i32_0 = arith.constant 0 : i32
    %c0_i32_1 = arith.constant 0 : i32
    return %c0_i32, %c0_i32_0 : i32, i32
  }
  func.func @transform_4(%arg0: i32) -> (i32, i32) {
    %c0_i32 = arith.constant 0 : i32
    %c0_i32_0 = arith.constant 0 : i32
    %c0_i32_1 = arith.constant 0 : i32
    return %c0_i32, %c0_i32_0 : i32, i32
  }
  func.func @transform_5(%arg0: i32) -> (i32, i32, i32) {
    %c0_i32 = arith.constant 0 : i32
    %c0_i32_0 = arith.constant 0 : i32
    %c0_i32_1 = arith.constant 0 : i32
    return %arg0, %c0_i32, %c0_i32_0 : i32, i32, i32
  }
}

</mosaic_0001>

<llo_original>
// kernel: tile.38
$region0: #{tile.38}
  #allocation0 [shape = 's32[1]{0}', space=sflag, size = 0x4, scoped, tag = 'scoped memory for tile.38']
  %s0 = inlined_call_operand.vmem [shape: f32[32], index: 0, kind: input, shape index: {}]
  %s1 = inlined_call_operand.vmem [shape: f32[16,32], index: 1, kind: output, shape index: {}]
  // Predicated region
  $region2: #{tile.38} parent=0 // pred_check
    _
  $region3: #{tile.38} parent=0 // pred_check_branch
    %3 = sbr.rel (0) target = $region5
  $region4: #{tile.38} parent=0 // pred_region
    _
  $region5: #{tile.38} parent=0 // pred_fallthru
    _
  %v4 = vld [vmem:[%s0] ss:$0 sm:$0xff]
  %5 = vst [vmem:[%s1] sm:$0xff] %v4
  %s6 = scalar_lea.vmem %s1, 8
  %7 = vst [vmem:[%s6] sm:$0xff] %v4

// kernel: tile.39
$region0: #{tile.39}
  %s0 = inlined_call_operand.vmem [shape: f32[16,32], index: 0, kind: input, shape index: {}]
  %s1 = inlined_call_operand.vmem [shape: f32[1,512], index: 1, kind: output, shape index: {}]
  $region1: #{tile.39} parent=0
    #allocation0 [shape = 'u8[16384]{0}', space=vmem, size = 0x4000, scoped, tag = 'scoped mem for output reshape']
    %v2 = vld [vmem:[%s0] ss:$4 sm:$0xf]
    %vm3 = vcmask 261120
    %4 = vst.msk [vmem:[#allocation0] ss:$8 sm:$0xf] %vm3, %v2
    %s5 = scalar_lea.vmem %s0, 3
    %v6 = vld [vmem:[%s5] ss:$4 sm:$0xf]
    %7 = vrot.lane.b32.xlu0 %v6, 96
    %v8 = vpop.permute.xlu0 %7
    %vm9 = vcmask 1048320
    %10 = vst.msk [vmem:[#allocation0] ss:$8 sm:$0xf] %vm9, %v8
    %s11 = scalar_lea.vmem %s0, 2
    %v12 = vld [vmem:[%s11] ss:$4 sm:$0xf]
    %13 = vrot.lane.b32.xlu0 %v12, 64
    %v14 = vpop.permute.xlu0 %13
    %vm15 = vcmask 785920
    %16 = vst.msk [vmem:[#allocation0] ss:$8 sm:$0xf] %vm15, %v14
    %s17 = scalar_lea.vmem %s0, 1
    %v18 = vld [vmem:[%s17] ss:$4 sm:$0xf]
    %19 = vrot.lane.b32.xlu0 %v18, 32
    %v20 = vpop.permute.xlu0 %19
    %vm21 = vcmask 523520
    %22 = vst.msk [vmem:[#allocation0] ss:$8 sm:$0xf] %vm21, %v20
    %s24 = sshllo.u32 0, 1
    %v26 = vld [vmem:[#allocation0] sm:%s24]
    %s27 = sshllo.u32 0, 1
    %28 = vst [vmem:[%s1] sm:%s27] %v26
    %s29 = scalar_lea.vmem [#allocation0], 8
    %v30 = vld [vmem:[%s29] sm:%s24]
    %s31 = sshllo.u32 0, 1
    %s32 = scalar_lea.vmem %s1, 1
    %33 = vst [vmem:[%s32] sm:%s31] %v30
    %s34 = scalar_lea.vmem [#allocation0], 16
    %v35 = vld [vmem:[%s34] sm:%s24]
    %s36 = sshllo.u32 0, 1
    %s37 = smul.addr 1, 2
    %s38 = scalar_lea.vmem %s1, %s37
    %39 = vst [vmem:[%s38] sm:%s36] %v35
    %s40 = scalar_lea.vmem [#allocation0], 24
    %v41 = vld [vmem:[%s40] sm:%s24]
    %s42 = sshllo.u32 0, 1
    %s43 = smul.addr 1, 3
    %s44 = scalar_lea.vmem %s1, %s43
    %45 = vst [vmem:[%s44] sm:%s42] %v41

// kernel: tile.29
$region0: #{tile.29}
  %s0 = inlined_call_operand.vmem [shape: f32[9,16,32], index: 0, kind: input, shape index: {}]
  %s1 = inlined_call_operand.vmem [shape: f32[9,512], index: 1, kind: output, shape index: {}]
  %v2 = vld [vmem:[%s0] ss:$4 sm:$0xff]
  %vm3 = vcmask 261120
  %4 = vst.msk [vmem:[%s1] ss:$8 sm:$0xf] %vm3, %v2
  %s5 = scalar_lea.vmem %s1, 4294967265
  %6 = vst.msk [vmem:[%s5] ss:$8 sm:$0xf0] %vm3, %v2
  %s7 = scalar_lea.vmem %s0, 32
  %v8 = vld [vmem:[%s7] ss:$4 sm:$0xff]
  %vm9 = vcmask 261120
  %s10 = scalar_lea.vmem %s1, 2
  %11 = vst.msk [vmem:[%s10] ss:$8 sm:$0xf] %vm9, %v8
  %s12 = scalar_lea.vmem %s1, 4294967267
  %13 = vst.msk [vmem:[%s12] ss:$8 sm:$0xf0] %vm9, %v8
  %s14 = scalar_lea.vmem %s0, 64
  %v15 = vld [vmem:[%s14] ss:$4 sm:$0xff]
  %vm16 = vcmask 261120
  %s17 = scalar_lea.vmem %s1, 4
  %18 = vst.msk [vmem:[%s17] ss:$8 sm:$0xf] %vm16, %v15
  %s19 = scalar_lea.vmem %s1, 4294967269
  %20 = vst.msk [vmem:[%s19] ss:$8 sm:$0xf0] %vm16, %v15
  %s21 = scalar_lea.vmem %s0, 96
  %v22 = vld [vmem:[%s21] ss:$4 sm:$0xff]
  %vm23 = vcmask 261120
  %s24 = scalar_lea.vmem %s1, 6
  %25 = vst.msk [vmem:[%s24] ss:$8 sm:$0xf] %vm23, %v22
  %s26 = scalar_lea.vmem %s1, 4294967271
  %27 = vst.msk [vmem:[%s26] ss:$8 sm:$0xf0] %vm23, %v22
  %s28 = scalar_lea.vmem %s0, 128
  %v29 = vld [vmem:[%s28] ss:$4 sm:$0xf]
  %vm30 = vcmask 261120
  %s31 = scalar_lea.vmem %s1, 32
  %32 = vst.msk [vmem:[%s31] ss:$8 sm:$0xf] %vm30, %v29
  %s33 = scalar_lea.vmem %s0, 3
  %s34 = smov 3
  %v35 = vld [vmem:[%s33] ss:$16 sm:%s34]
  %s36 = scalar_lea.vmem %s0, 3
  %s37 = smov 12
  %v38 = vld [vmem:[%s36] ss:$16 sm:%s37]
  %vm39 = vcmask 1043458
  %v40 = vsel %vm39, %v38, %v35
  %s41 = scalar_lea.vmem %s0, 3
  %s42 = smov 48
  %v43 = vld [vmem:[%s41] ss:$16 sm:%s42]
  %vm44 = vcmask 1045508
  %v45 = vsel %vm44, %v43, %v40
  %s46 = scalar_lea.vmem %s0, 3
  %s47 = smov 192
  %v48 = vld [vmem:[%s46] ss:$16 sm:%s47]
  %vm49 = vcmask 1047558
  %v50 = vsel %vm49, %v48, %v45
  %51 = vrot.lane.b32.xlu0 %v50, 96
  %v52 = vpop.permute.xlu0 %51
  %vm53 = vcmask 1048320
  %54 = vst.msk [vmem:[%s1] sm:$0xff] %vm53, %v52
  %s55 = scalar_lea.vmem %s0, 131
  %s56 = smov 3
  %v57 = vld [vmem:[%s55] ss:$-124 sm:%s56]
  %s58 = scalar_lea.vmem %s0, 4294967287
  %s59 = smov 12
  %v60 = vld [vmem:[%s58] ss:$16 sm:%s59]
  %vm61 = vcmask 1043458
  %v62 = vsel %vm61, %v60, %v57
  %s63 = scalar_lea.vmem %s0, 4294967287
  %s64 = smov 48
  %v65 = vld [vmem:[%s63] ss:$16 sm:%s64]
  %vm66 = vcmask 1045508
  %v67 = vsel %vm66, %v65, %v62
  %s68 = scalar_lea.vmem %s0, 4294967287
  %s69 = smov 192
  %v70 = vld [vmem:[%s68] ss:$16 sm:%s69]
  %vm71 = vcmask 1047558
  %v72 = vsel %vm71, %v70, %v67
  %73 = vrot.lane.b32.xlu0 %v72, 96
  %v74 = vpop.permute.xlu0 %73
  %vm75 = vcmask 1048320
  %s76 = scalar_lea.vmem %s1, 32
  %77 = vst.msk [vmem:[%s76] ss:$-24 sm:$0x3] %vm75, %v74
  %s78 = scalar_lea.vmem %s1, 7
  %79 = vst.msk [vmem:[%s78] sm:$0xfc] %vm75, %v74
  %s80 = scalar_lea.vmem %s0, 135
  %s81 = smov 3
  %v82 = vld [vmem:[%s80] ss:$-16 sm:%s81]
  %s83 = scalar_lea.vmem %s0, 4294967275
  %s84 = smov 12
  %v85 = vld [vmem:[%s83] ss:$16 sm:%s84]
  %vm86 = vcmask 1043458
  %v87 = vsel %vm86, %v85, %v82
  %s88 = scalar_lea.vmem %s0, 4294967275
  %s89 = smov 48
  %v90 = vld [vmem:[%s88] ss:$16 sm:%s89]
  %vm91 = vcmask 1045508
  %v92 = vsel %vm91, %v90, %v87
  %s93 = scalar_lea.vmem %s0, 4294967275
  %s94 = smov 192
  %v95 = vld [vmem:[%s93] ss:$16 sm:%s94]
  %vm96 = vcmask 1047558
  %v97 = vsel %vm96, %v95, %v92
  %98 = vrot.lane.b32.xlu0 %v97, 96
  %v99 = vpop.permute.xlu0 %98
  %vm100 = vcmask 1048320
  %s101 = scalar_lea.vmem %s1, 40
  %102 = vst.msk [vmem:[%s101] ss:$-25 sm:$0x3] %vm100, %v99
  %s103 = scalar_lea.vmem %s1, 14
  %104 = vst.msk [vmem:[%s103] sm:$0xfc] %vm100, %v99
  %s105 = scalar_lea.vmem %s0, 139
  %v106 = vld [vmem:[%s105] sm:$0x1]
  %s107 = scalar_lea.vmem %s0, 91
  %s108 = smov 6
  %v109 = vld [vmem:[%s107] ss:$16 sm:%s108]
  %vm110 = vcmask 1042433
  %v111 = vsel %vm110, %v109, %v106
  %s112 = scalar_lea.vmem %s0, 4294967263
  %s113 = smov 24
  %v114 = vld [vmem:[%s112] ss:$16 sm:%s113]
  %vm115 = vcmask 1044483
  %v116 = vsel %vm115, %v114, %v111
  %s117 = scalar_lea.vmem %s0, 4294967263
  %s118 = smov 96
  %v119 = vld [vmem:[%s117] ss:$16 sm:%s118]
  %vm120 = vcmask 1046533
  %v121 = vsel %vm120, %v119, %v116
  %s122 = scalar_lea.vmem %s0, 72
  %v123 = vld [vmem:[%s122] sm:$0x80]
  %vm124 = vcmask 1047559
  %v125 = vsel %vm124, %v123, %v121
  %126 = vrot.lane.b32.xlu0 %v125, 96
  %v127 = vpop.permute.xlu0 %126
  %vm128 = vcmask 1048320
  %s129 = scalar_lea.vmem %s1, 48
  %130 = vst.msk [vmem:[%s129] ss:$-26 sm:$0x3] %vm128, %v127
  %s131 = scalar_lea.vmem %s1, 21
  %132 = vst.msk [vmem:[%s131] sm:$0xfc] %vm128, %v127
  %s133 = scalar_lea.vmem %s0, 143
  %s134 = smov 3
  %v135 = vld [vmem:[%s133] ss:$-48 sm:%s134]
  %s136 = scalar_lea.vmem %s0, 79
  %s137 = smov 12
  %v138 = vld [vmem:[%s136] ss:$16 sm:%s137]
  %vm139 = vcmask 1043458
  %v140 = vsel %vm139, %v138, %v135
  %141 = vrot.lane.b32.xlu0 %v140, 96
  %v142 = vpop.permute.xlu0 %141
  %vm143 = vcmask 1048320
  %s144 = scalar_lea.vmem %s1, 56
  %145 = vst.msk [vmem:[%s144] ss:$-27 sm:$0x3] %vm143, %v142
  %s146 = scalar_lea.vmem %s1, 28
  %147 = vst.msk [vmem:[%s146] sm:$0xc] %vm143, %v142
  %s148 = scalar_lea.vmem %s0, 2
  %s149 = smov 3
  %v150 = vld [vmem:[%s148] ss:$16 sm:%s149]
  %s151 = scalar_lea.vmem %s0, 2
  %s152 = smov 12
  %v153 = vld [vmem:[%s151] ss:$16 sm:%s152]
  %vm154 = vcmask 1043458
  %v155 = vsel %vm154, %v153, %v150
  %s156 = scalar_lea.vmem %s0, 2
  %s157 = smov 48
  %v158 = vld [vmem:[%s156] ss:$16 sm:%s157]
  %vm159 = vcmask 1045508
  %v160 = vsel %vm159, %v158, %v155
  %s161 = scalar_lea.vmem %s0, 2
  %s162 = smov 192
  %v163 = vld [vmem:[%s161] ss:$16 sm:%s162]
  %vm164 = vcmask 1047558
  %v165 = vsel %vm164, %v163, %v160
  %166 = vrot.lane.b32.xlu0 %v165, 64
  %v167 = vpop.permute.xlu0 %166
  %vm168 = vcmask 785920
  %169 = vst.msk [vmem:[%s1] sm:$0xff] %vm168, %v167
  %s170 = scalar_lea.vmem %s0, 130
  %s171 = smov 3
  %v172 = vld [vmem:[%s170] ss:$-124 sm:%s171]
  %s173 = scalar_lea.vmem %s0, 4294967286
  %s174 = smov 12
  %v175 = vld [vmem:[%s173] ss:$16 sm:%s174]
  %vm176 = vcmask 1043458
  %v177 = vsel %vm176, %v175, %v172
  %s178 = scalar_lea.vmem %s0, 4294967286
  %s179 = smov 48
  %v180 = vld [vmem:[%s178] ss:$16 sm:%s179]
  %vm181 = vcmask 1045508
  %v182 = vsel %vm181, %v180, %v177
  %s183 = scalar_lea.vmem %s0, 4294967286
  %s184 = smov 192
  %v185 = vld [vmem:[%s183] ss:$16 sm:%s184]
  %vm186 = vcmask 1047558
  %v187 = vsel %vm186, %v185, %v182
  %188 = vrot.lane.b32.xlu0 %v187, 64
  %v189 = vpop.permute.xlu0 %188
  %vm190 = vcmask 785920
  %s191 = scalar_lea.vmem %s1, 32
  %192 = vst.msk [vmem:[%s191] ss:$-24 sm:$0x3] %vm190, %v189
  %s193 = scalar_lea.vmem %s1, 7
  %194 = vst.msk [vmem:[%s193] sm:$0xfc] %vm190, %v189
  %s195 = scalar_lea.vmem %s0, 134
  %s196 = smov 3
  %v197 = vld [vmem:[%s195] ss:$-16 sm:%s196]
  %s198 = scalar_lea.vmem %s0, 4294967274
  %s199 = smov 12
  %v200 = vld [vmem:[%s198] ss:$16 sm:%s199]
  %vm201 = vcmask 1043458
  %v202 = vsel %vm201, %v200, %v197
  %s203 = scalar_lea.vmem %s0, 4294967274
  %s204 = smov 48
  %v205 = vld [vmem:[%s203] ss:$16 sm:%s204]
  %vm206 = vcmask 1045508
  %v207 = vsel %vm206, %v205, %v202
  %s208 = scalar_lea.vmem %s0, 4294967274
  %s209 = smov 192
  %v210 = vld [vmem:[%s208] ss:$16 sm:%s209]
  %vm211 = vcmask 1047558
  %v212 = vsel %vm211, %v210, %v207
  %213 = vrot.lane.b32.xlu0 %v212, 64
  %v214 = vpop.permute.xlu0 %213
  %vm215 = vcmask 785920
  %s216 = scalar_lea.vmem %s1, 40
  %217 = vst.msk [vmem:[%s216] ss:$-25 sm:$0x3] %vm215, %v214
  %s218 = scalar_lea.vmem %s1, 14
  %219 = vst.msk [vmem:[%s218] sm:$0xfc] %vm215, %v214
  %s220 = scalar_lea.vmem %s0, 138
  %v221 = vld [vmem:[%s220] sm:$0x1]
  %s222 = scalar_lea.vmem %s0, 90
  %s223 = smov 6
  %v224 = vld [vmem:[%s222] ss:$16 sm:%s223]
  %vm225 = vcmask 1042433
  %v226 = vsel %vm225, %v224, %v221
  %s227 = scalar_lea.vmem %s0, 4294967262
  %s228 = smov 24
  %v229 = vld [vmem:[%s227] ss:$16 sm:%s228]
  %vm230 = vcmask 1044483
  %v231 = vsel %vm230, %v229, %v226
  %s232 = scalar_lea.vmem %s0, 4294967262
  %s233 = smov 96
  %v234 = vld [vmem:[%s232] ss:$16 sm:%s233]
  %vm235 = vcmask 1046533
  %v236 = vsel %vm235, %v234, %v231
  %s237 = scalar_lea.vmem %s0, 71
  %v238 = vld [vmem:[%s237] sm:$0x80]
  %vm239 = vcmask 1047559
  %v240 = vsel %vm239, %v238, %v236
  %241 = vrot.lane.b32.xlu0 %v240, 64
  %v242 = vpop.permute.xlu0 %241
  %vm243 = vcmask 785920
  %s244 = scalar_lea.vmem %s1, 48
  %245 = vst.msk [vmem:[%s244] ss:$-26 sm:$0x3] %vm243, %v242
  %s246 = scalar_lea.vmem %s1, 21
  %247 = vst.msk [vmem:[%s246] sm:$0xfc] %vm243, %v242
  %s248 = scalar_lea.vmem %s0, 142
  %s249 = smov 3
  %v250 = vld [vmem:[%s248] ss:$-48 sm:%s249]
  %s251 = scalar_lea.vmem %s0, 78
  %s252 = smov 12
  %v253 = vld [vmem:[%s251] ss:$16 sm:%s252]
  %vm254 = vcmask 1043458
  %v255 = vsel %vm254, %v253, %v250
  %256 = vrot.lane.b32.xlu0 %v255, 64
  %v257 = vpop.permute.xlu0 %256
  %vm258 = vcmask 785920
  %s259 = scalar_lea.vmem %s1, 56
  %260 = vst.msk [vmem:[%s259] ss:$-27 sm:$0x3] %vm258, %v257
  %s261 = scalar_lea.vmem %s1, 28
  %262 = vst.msk [vmem:[%s261] sm:$0xc] %vm258, %v257
  %s263 = scalar_lea.vmem %s0, 1
  %s264 = smov 3
  %v265 = vld [vmem:[%s263] ss:$16 sm:%s264]
  %s266 = scalar_lea.vmem %s0, 1
  %s267 = smov 12
  %v268 = vld [vmem:[%s266] ss:$16 sm:%s267]
  %vm269 = vcmask 1043458
  %v270 = vsel %vm269, %v268, %v265
  %s271 = scalar_lea.vmem %s0, 1
  %s272 = smov 48
  %v273 = vld [vmem:[%s271] ss:$16 sm:%s272]
  %vm274 = vcmask 1045508
  %v275 = vsel %vm274, %v273, %v270
  %s276 = scalar_lea.vmem %s0, 1
  %s277 = smov 192
  %v278 = vld [vmem:[%s276] ss:$16 sm:%s277]
  %vm279 = vcmask 1047558
  %v280 = vsel %vm279, %v278, %v275
  %281 = vrot.lane.b32.xlu0 %v280, 32
  %v282 = vpop.permute.xlu0 %281
  %vm283 = vcmask 523520
  %284 = vst.msk [vmem:[%s1] sm:$0xff] %vm283, %v282
  %s285 = scalar_lea.vmem %s0, 129
  %s286 = smov 3
  %v287 = vld [vmem:[%s285] ss:$-124 sm:%s286]
  %s288 = scalar_lea.vmem %s0, 4294967285
  %s289 = smov 12
  %v290 = vld [vmem:[%s288] ss:$16 sm:%s289]
  %vm291 = vcmask 1043458
  %v292 = vsel %vm291, %v290, %v287
  %s293 = scalar_lea.vmem %s0, 4294967285
  %s294 = smov 48
  %v295 = vld [vmem:[%s293] ss:$16 sm:%s294]
  %vm296 = vcmask 1045508
  %v297 = vsel %vm296, %v295, %v292
  %s298 = scalar_lea.vmem %s0, 4294967285
  %s299 = smov 192
  %v300 = vld [vmem:[%s298] ss:$16 sm:%s299]
  %vm301 = vcmask 1047558
  %v302 = vsel %vm301, %v300, %v297
  %303 = vrot.lane.b32.xlu0 %v302, 32
  %v304 = vpop.permute.xlu0 %303
  %vm305 = vcmask 523520
  %s306 = scalar_lea.vmem %s1, 32
  %307 = vst.msk [vmem:[%s306] ss:$-24 sm:$0x3] %vm305, %v304
  %s308 = scalar_lea.vmem %s1, 7
  %309 = vst.msk [vmem:[%s308] sm:$0xfc] %vm305, %v304
  %s310 = scalar_lea.vmem %s0, 133
  %s311 = smov 3
  %v312 = vld [vmem:[%s310] ss:$-16 sm:%s311]
  %s313 = scalar_lea.vmem %s0, 4294967273
  %s314 = smov 12
  %v315 = vld [vmem:[%s313] ss:$16 sm:%s314]
  %vm316 = vcmask 1043458
  %v317 = vsel %vm316, %v315, %v312
  %s318 = scalar_lea.vmem %s0, 4294967273
  %s319 = smov 48
  %v320 = vld [vmem:[%s318] ss:$16 sm:%s319]
  %vm321 = vcmask 1045508
  %v322 = vsel %vm321, %v320, %v317
  %s323 = scalar_lea.vmem %s0, 4294967273
  %s324 = smov 192
  %v325 = vld [vmem:[%s323] ss:$16 sm:%s324]
  %vm326 = vcmask 1047558
  %v327 = vsel %vm326, %v325, %v322
  %328 = vrot.lane.b32.xlu0 %v327, 32
  %v329 = vpop.permute.xlu0 %328
  %vm330 = vcmask 523520
  %s331 = scalar_lea.vmem %s1, 40
  %332 = vst.msk [vmem:[%s331] ss:$-25 sm:$0x3] %vm330, %v329
  %s333 = scalar_lea.vmem %s1, 14
  %334 = vst.msk [vmem:[%s333] sm:$0xfc] %vm330, %v329
  %s335 = scalar_lea.vmem %s0, 137
  %v336 = vld [vmem:[%s335] sm:$0x1]
  %s337 = scalar_lea.vmem %s0, 89
  %s338 = smov 6
  %v339 = vld [vmem:[%s337] ss:$16 sm:%s338]
  %vm340 = vcmask 1042433
  %v341 = vsel %vm340, %v339, %v336
  %s342 = scalar_lea.vmem %s0, 4294967261
  %s343 = smov 24
  %v344 = vld [vmem:[%s342] ss:$16 sm:%s343]
  %vm345 = vcmask 1044483
  %v346 = vsel %vm345, %v344, %v341
  %s347 = scalar_lea.vmem %s0, 4294967261
  %s348 = smov 96
  %v349 = vld [vmem:[%s347] ss:$16 sm:%s348]
  %vm350 = vcmask 1046533
  %v351 = vsel %vm350, %v349, %v346
  %s352 = scalar_lea.vmem %s0, 70
  %v353 = vld [vmem:[%s352] sm:$0x80]
  %vm354 = vcmask 1047559
  %v355 = vsel %vm354, %v353, %v351
  %356 = vrot.lane.b32.xlu0 %v355, 32
  %v357 = vpop.permute.xlu0 %356
  %vm358 = vcmask 523520
  %s359 = scalar_lea.vmem %s1, 48
  %360 = vst.msk [vmem:[%s359] ss:$-26 sm:$0x3] %vm358, %v357
  %s361 = scalar_lea.vmem %s1, 21
  %362 = vst.msk [vmem:[%s361] sm:$0xfc] %vm358, %v357
  %s363 = scalar_lea.vmem %s0, 141
  %s364 = smov 3
  %v365 = vld [vmem:[%s363] ss:$-48 sm:%s364]
  %s366 = scalar_lea.vmem %s0, 77
  %s367 = smov 12
  %v368 = vld [vmem:[%s366] ss:$16 sm:%s367]
  %vm369 = vcmask 1043458
  %v370 = vsel %vm369, %v368, %v365
  %371 = vrot.lane.b32.xlu0 %v370, 32
  %v372 = vpop.permute.xlu0 %371
  %vm373 = vcmask 523520
  %s374 = scalar_lea.vmem %s1, 56
  %375 = vst.msk [vmem:[%s374] ss:$-27 sm:$0x3] %vm373, %v372
  %s376 = scalar_lea.vmem %s1, 28
  %377 = vst.msk [vmem:[%s376] sm:$0xc] %vm373, %v372

// kernel: basic_block_forward.1
$region0: #{basic_block_forward.1}
  #allocation0 [shape = 'u32[]', space=smem, size = 0x4, offset = 0x4, fixed_abs, tag = 'smem constant byte address 0x4 - core index']
  #allocation1 [shape = 'u32[144,128]{1,0:T(1,128)}', space=vmem, size = 0x12000, scoped, tag = 'internal scratch']
  %s0 = inlined_call_operand.vmem [shape: f32[2,16,512], index: 0, kind: input, shape index: {}]
  %s1 = inlined_call_operand.vmem [shape: f32[9,512], index: 1, kind: input, shape index: {}]
  %s2 = inlined_call_operand.vmem [shape: f32[1,512], index: 2, kind: input, shape index: {}]
  %s3 = inlined_call_operand.vmem [shape: f32[9,512], index: 3, kind: input, shape index: {}]
  %s4 = inlined_call_operand.vmem [shape: f32[1,512], index: 4, kind: input, shape index: {}]
  %s5 = inlined_call_operand.vmem [shape: f32[2,16,512], index: 5, kind: output, shape index: {}]
  %s6 = sld [smem:[#allocation0]]
  $region30: #{basic_block_forward.1} parent=0
    _
  %s8 = ssub.s32 1, %s6
  %s9 = scalar_select 0, %s8, %s6
  // Predicated region
  $region2: #{basic_block_forward.1} parent=0 // pred_check
    _
  $region3: #{basic_block_forward.1} parent=0 // pred_check_branch
    %11 = sbr.rel (0) target = $region5
  $region4: #{basic_block_forward.1} parent=0 // pred_region
    _
  $region5: #{basic_block_forward.1} parent=0 // pred_fallthru
    _
  // Predicated region
  $region6: #{basic_block_forward.1} parent=0 // pred_check
    _
  $region7: #{basic_block_forward.1} parent=0 // pred_check_branch
    %13 = sbr.rel (0) target = $region9
  $region8: #{basic_block_forward.1} parent=0 // pred_region
    _
  $region9: #{basic_block_forward.1} parent=0 // pred_fallthru
    _
  // Predicated region
  $region10: #{basic_block_forward.1} parent=0 // pred_check
    _
  $region11: #{basic_block_forward.1} parent=0 // pred_check_branch
    %15 = sbr.rel (0) target = $region13
  $region12: #{basic_block_forward.1} parent=0 // pred_region
    _
  $region13: #{basic_block_forward.1} parent=0 // pred_fallthru
    _
  // Predicated region
  $region14: #{basic_block_forward.1} parent=0 // pred_check
    _
  $region15: #{basic_block_forward.1} parent=0 // pred_check_branch
    %17 = sbr.rel (0) target = $region17
  $region16: #{basic_block_forward.1} parent=0 // pred_region
    _
  $region17: #{basic_block_forward.1} parent=0 // pred_fallthru
    _
  // Predicated region
  $region18: #{basic_block_forward.1} parent=0 // pred_check
    _
  $region19: #{basic_block_forward.1} parent=0 // pred_check_branch
    %19 = sbr.rel (0) target = $region21
  $region20: #{basic_block_forward.1} parent=0 // pred_region
    _
  $region21: #{basic_block_forward.1} parent=0 // pred_fallthru
    _
  %v20 = vld [vmem:[%s0] sm:$0xff]
  %v21 = vld [vmem:[%s0 + $0x8] sm:$0xff]
  %v22 = vld [vmem:[%s0 + $0x10] sm:$0xff]
  %v23 = vld [vmem:[%s0 + $0x18] sm:$0xff]
  %v24 = vld [vmem:[%s0 + $0x20] sm:$0xff]
  %v25 = vld [vmem:[%s0 + $0x28] sm:$0xff]
  %v26 = vld [vmem:[%s0 + $0x30] sm:$0xff]
  %v27 = vld [vmem:[%s0 + $0x38] sm:$0xff]
  %v28 = vld [vmem:[%s0 + $0x40] sm:$0xff]
  %v29 = vld [vmem:[%s0 + $0x48] sm:$0xff]
  %v30 = vld [vmem:[%s0 + $0x50] sm:$0xff]
  %v31 = vld [vmem:[%s0 + $0x58] sm:$0xff]
  %v32 = vld [vmem:[%s0 + $0x60] sm:$0xff]
  %v33 = vld [vmem:[%s0 + $0x68] sm:$0xff]
  %v34 = vld [vmem:[%s0 + $0x70] sm:$0xff]
  %v35 = vld [vmem:[%s0 + $0x78] sm:$0xff]
  %v36 = vlaneseq
  %v37 = vshrl.u32 %v36, 7
  %v38 = vadd.s32 %v37, 8
  %vm39 = vcmp.gt.s32.totalorder %v37, 0
  %vm40 = vcmp.gt.s32.totalorder %v38, 0
  %vm41 = vcmp.lt.s32.totalorder %v37, 15
  %vm42 = vcmp.lt.s32.totalorder %v38, 15
  %v43 = vrot.slane %v20, 7
  %v44 = vrot.slane %v21, 7
  %v45 = vrot.slane %v22, 7
  %v46 = vrot.slane %v23, 7
  %v47 = vrot.slane %v24, 7
  %v48 = vrot.slane %v25, 7
  %v49 = vrot.slane %v26, 7
  %v50 = vrot.slane %v27, 7
  %v51 = vrot.slane %v28, 7
  %v52 = vrot.slane %v29, 7
  %v53 = vrot.slane %v30, 7
  %v54 = vrot.slane %v31, 7
  %v55 = vrot.slane %v32, 7
  %v56 = vrot.slane %v33, 7
  %v57 = vrot.slane %v34, 7
  %v58 = vrot.slane %v35, 7
  %vm59 = vcmp.lt.s32.totalorder %v37, 1
  %v60 = vsel %vm59, %v51, %v55
  %v61 = vsel %vm59, %v52, %v56
  %v62 = vsel %vm59, %v53, %v57
  %v63 = vsel %vm59, %v54, %v58
  %v64 = vsel %vm59, %v47, %v51
  %v65 = vsel %vm59, %v48, %v52
  %v66 = vsel %vm59, %v49, %v53
  %v67 = vsel %vm59, %v50, %v54
  %v68 = vsel %vm59, %v43, %v47
  %v69 = vsel %vm59, %v44, %v48
  %v70 = vsel %vm59, %v45, %v49
  %v71 = vsel %vm59, %v46, %v50
  %v72 = vsel %vm59, %v55, %v43
  %v73 = vsel %vm59, %v56, %v44
  %v74 = vsel %vm59, %v57, %v45
  %v75 = vsel %vm59, %v58, %v46
  %v76 = vsel %vm39, %v72, 0.0
  %v77 = vsel %vm39, %v73, 0.0
  %v78 = vsel %vm39, %v74, 0.0
  %v79 = vsel %vm39, %v75, 0.0
  %v80 = vsel %vm40, %v68, 0.0
  %v81 = vsel %vm40, %v69, 0.0
  %v82 = vsel %vm40, %v70, 0.0
  %v83 = vsel %vm40, %v71, 0.0
  %v84 = vsel %vm39, %v64, 0.0
  %v85 = vsel %vm39, %v65, 0.0
  %v86 = vsel %vm39, %v66, 0.0
  %v87 = vsel %vm39, %v67, 0.0
  %v88 = vsel %vm40, %v60, 0.0
  %v89 = vsel %vm40, %v61, 0.0
  %v90 = vsel %vm40, %v62, 0.0
  %v91 = vsel %vm40, %v63, 0.0
  %92 = vrot.lane.b32.xlu0 %v76, 32
  %v93 = vpop.permute.xlu0 %92
  %94 = vrot.lane.b32.xlu0 %v80, 32
  %v95 = vpop.permute.xlu0 %94
  %96 = vrot.lane.b32.xlu0 %v84, 32
  %v97 = vpop.permute.xlu0 %96
  %98 = vrot.lane.b32.xlu0 %v88, 32
  %v99 = vpop.permute.xlu0 %98
  %100 = vrot.lane.b32.xlu0 %v77, 32
  %v101 = vpop.permute.xlu0 %100
  %102 = vrot.lane.b32.xlu0 %v81, 32
  %v103 = vpop.permute.xlu0 %102
  %104 = vrot.lane.b32.xlu0 %v85, 32
  %v105 = vpop.permute.xlu0 %104
  %106 = vrot.lane.b32.xlu0 %v89, 32
  %v107 = vpop.permute.xlu0 %106
  %108 = vrot.lane.b32.xlu0 %v78, 32
  %v109 = vpop.permute.xlu0 %108
  %110 = vrot.lane.b32.xlu0 %v82, 32
  %v111 = vpop.permute.xlu0 %110
  %112 = vrot.lane.b32.xlu0 %v86, 32
  %v113 = vpop.permute.xlu0 %112
  %114 = vrot.lane.b32.xlu0 %v90, 32
  %v115 = vpop.permute.xlu0 %114
  %116 = vrot.lane.b32.xlu0 %v79, 32
  %v117 = vpop.permute.xlu0 %116
  %118 = vrot.lane.b32.xlu0 %v83, 32
  %v119 = vpop.permute.xlu0 %118
  %120 = vrot.lane.b32.xlu0 %v87, 32
  %v121 = vpop.permute.xlu0 %120
  %122 = vrot.lane.b32.xlu0 %v91, 32
  %v123 = vpop.permute.xlu0 %122
  %v124 = vlaneseq
  %v125 = vand.u32 %v124, 127
  %vm126 = vcmp.lt.s32.totalorder %v125, 32
  %v127 = vsel %vm126, %v109, %v117
  %v128 = vsel %vm126, %v111, %v119
  %v129 = vsel %vm126, %v113, %v121
  %v130 = vsel %vm126, %v115, %v123
  %v131 = vsel %vm126, %v101, %v109
  %v132 = vsel %vm126, %v103, %v111
  %v133 = vsel %vm126, %v105, %v113
  %v134 = vsel %vm126, %v107, %v115
  %v135 = vsel %vm126, %v93, %v101
  %v136 = vsel %vm126, %v95, %v103
  %v137 = vsel %vm126, %v97, %v105
  %v138 = vsel %vm126, %v99, %v107
  %v139 = vsel %vm126, %v117, %v93
  %v140 = vsel %vm126, %v119, %v95
  %v141 = vsel %vm126, %v121, %v97
  %v142 = vsel %vm126, %v123, %v99
  %143 = vrot.lane.b32.xlu0 %v76, 96
  %v144 = vpop.permute.xlu0 %143
  %145 = vrot.lane.b32.xlu0 %v80, 96
  %v146 = vpop.permute.xlu0 %145
  %147 = vrot.lane.b32.xlu0 %v84, 96
  %v148 = vpop.permute.xlu0 %147
  %149 = vrot.lane.b32.xlu0 %v88, 96
  %v150 = vpop.permute.xlu0 %149
  %151 = vrot.lane.b32.xlu0 %v77, 96
  %v152 = vpop.permute.xlu0 %151
  %153 = vrot.lane.b32.xlu0 %v81, 96
  %v154 = vpop.permute.xlu0 %153
  %155 = vrot.lane.b32.xlu0 %v85, 96
  %v156 = vpop.permute.xlu0 %155
  %157 = vrot.lane.b32.xlu0 %v89, 96
  %v158 = vpop.permute.xlu0 %157
  %159 = vrot.lane.b32.xlu0 %v78, 96
  %v160 = vpop.permute.xlu0 %159
  %161 = vrot.lane.b32.xlu0 %v82, 96
  %v162 = vpop.permute.xlu0 %161
  %163 = vrot.lane.b32.xlu0 %v86, 96
  %v164 = vpop.permute.xlu0 %163
  %165 = vrot.lane.b32.xlu0 %v90, 96
  %v166 = vpop.permute.xlu0 %165
  %167 = vrot.lane.b32.xlu0 %v79, 96
  %v168 = vpop.permute.xlu0 %167
  %169 = vrot.lane.b32.xlu0 %v83, 96
  %v170 = vpop.permute.xlu0 %169
  %171 = vrot.lane.b32.xlu0 %v87, 96
  %v172 = vpop.permute.xlu0 %171
  %173 = vrot.lane.b32.xlu0 %v91, 96
  %v174 = vpop.permute.xlu0 %173
  %vm175 = vcmp.lt.s32.totalorder %v125, 96
  %v176 = vsel %vm175, %v160, %v168
  %v177 = vsel %vm175, %v162, %v170
  %v178 = vsel %vm175, %v164, %v172
  %v179 = vsel %vm175, %v166, %v174
  %v180 = vsel %vm175, %v152, %v160
  %v181 = vsel %vm175, %v154, %v162
  %v182 = vsel %vm175, %v156, %v164
  %v183 = vsel %vm175, %v158, %v166
  %v184 = vsel %vm175, %v144, %v152
  %v185 = vsel %vm175, %v146, %v154
  %v186 = vsel %vm175, %v148, %v156
  %v187 = vsel %vm175, %v150, %v158
  %v188 = vsel %vm175, %v168, %v144
  %v189 = vsel %vm175, %v170, %v146
  %v190 = vsel %vm175, %v172, %v148
  %v191 = vsel %vm175, %v174, %v150
  %v192 = vld [vmem:[%s1] ss:$8 sm:$0xf]
  %v194 = vlaneseq
  %v195 = vshrl.u32 %v194, 7
  %v196 = vsub.s32 0, %v195
  %v197 = vrot.slane %v192, %v196
  %v198 = vlaneseq
  %v199 = vshrl.u32 %v198, 7
  %v200 = vsub.s32 1, %v199
  %v201 = vrot.slane %v192, %v200
  %v202 = vlaneseq
  %v203 = vshrl.u32 %v202, 7
  %v204 = vsub.s32 2, %v203
  %v205 = vrot.slane %v192, %v204
  %v206 = vlaneseq
  %v207 = vshrl.u32 %v206, 7
  %v208 = vsub.s32 3, %v207
  %v209 = vrot.slane %v192, %v208
  %v214 = vmul.f32 %v139, %v197
  %v215 = vmul.f32 %v135, %v201
  %v216 = vmul.f32 %v131, %v205
  %v217 = vmul.f32 %v127, %v209
  %v218 = vmul.f32 %v140, %v197
  %v219 = vmul.f32 %v136, %v201
  %v220 = vmul.f32 %v132, %v205
  %v221 = vmul.f32 %v128, %v209
  %v222 = vmul.f32 %v141, %v197
  %v223 = vmul.f32 %v137, %v201
  %v224 = vmul.f32 %v133, %v205
  %v225 = vmul.f32 %v129, %v209
  %v226 = vmul.f32 %v142, %v197
  %v227 = vmul.f32 %v138, %v201
  %v228 = vmul.f32 %v134, %v205
  %v229 = vmul.f32 %v130, %v209
  %s230 = scalar_lea.vmem %s1, 1
  %v231 = vld [vmem:[%s230] ss:$8 sm:$0xf]
  %v233 = vlaneseq
  %v234 = vshrl.u32 %v233, 7
  %v235 = vsub.s32 0, %v234
  %v236 = vrot.slane %v231, %v235
  %v237 = vlaneseq
  %v238 = vshrl.u32 %v237, 7
  %v239 = vsub.s32 1, %v238
  %v240 = vrot.slane %v231, %v239
  %v241 = vlaneseq
  %v242 = vshrl.u32 %v241, 7
  %v243 = vsub.s32 2, %v242
  %v244 = vrot.slane %v231, %v243
  %v245 = vlaneseq
  %v246 = vshrl.u32 %v245, 7
  %v247 = vsub.s32 3, %v246
  %v248 = vrot.slane %v231, %v247
  %v253 = vmul.f32 %v76, %v236
  %v254 = vmul.f32 %v77, %v240
  %v255 = vmul.f32 %v78, %v244
  %v256 = vmul.f32 %v79, %v248
  %v257 = vmul.f32 %v80, %v236
  %v258 = vmul.f32 %v81, %v240
  %v259 = vmul.f32 %v82, %v244
  %v260 = vmul.f32 %v83, %v248
  %v261 = vmul.f32 %v84, %v236
  %v262 = vmul.f32 %v85, %v240
  %v263 = vmul.f32 %v86, %v244
  %v264 = vmul.f32 %v87, %v248
  %v265 = vmul.f32 %v88, %v236
  %v266 = vmul.f32 %v89, %v240
  %v267 = vmul.f32 %v90, %v244
  %v268 = vmul.f32 %v91, %v248
  %v269 = vadd.f32 %v214, %v253
  %v270 = vadd.f32 %v215, %v254
  %v271 = vadd.f32 %v216, %v255
  %v272 = vadd.f32 %v217, %v256
  %v273 = vadd.f32 %v218, %v257
  %v274 = vadd.f32 %v219, %v258
  %v275 = vadd.f32 %v220, %v259
  %v276 = vadd.f32 %v221, %v260
  %v277 = vadd.f32 %v222, %v261
  %v278 = vadd.f32 %v223, %v262
  %v279 = vadd.f32 %v224, %v263
  %v280 = vadd.f32 %v225, %v264
  %v281 = vadd.f32 %v226, %v265
  %v282 = vadd.f32 %v227, %v266
  %v283 = vadd.f32 %v228, %v267
  %v284 = vadd.f32 %v229, %v268
  %s285 = scalar_lea.vmem %s1, 2
  %v286 = vld [vmem:[%s285] ss:$8 sm:$0xf]
  %v288 = vlaneseq
  %v289 = vshrl.u32 %v288, 7
  %v290 = vsub.s32 0, %v289
  %v291 = vrot.slane %v286, %v290
  %v292 = vlaneseq
  %v293 = vshrl.u32 %v292, 7
  %v294 = vsub.s32 1, %v293
  %v295 = vrot.slane %v286, %v294
  %v296 = vlaneseq
  %v297 = vshrl.u32 %v296, 7
  %v298 = vsub.s32 2, %v297
  %v299 = vrot.slane %v286, %v298
  %v300 = vlaneseq
  %v301 = vshrl.u32 %v300, 7
  %v302 = vsub.s32 3, %v301
  %v303 = vrot.slane %v286, %v302
  %v308 = vmul.f32 %v184, %v291
  %v309 = vmul.f32 %v180, %v295
  %v310 = vmul.f32 %v176, %v299
  %v311 = vmul.f32 %v188, %v303
  %v312 = vmul.f32 %v185, %v291
  %v313 = vmul.f32 %v181, %v295
  %v314 = vmul.f32 %v177, %v299
  %v315 = vmul.f32 %v189, %v303
  %v316 = vmul.f32 %v186, %v291
  %v317 = vmul.f32 %v182, %v295
  %v318 = vmul.f32 %v178, %v299
  %v319 = vmul.f32 %v190, %v303
  %v320 = vmul.f32 %v187, %v291
  %v321 = vmul.f32 %v183, %v295
  %v322 = vmul.f32 %v179, %v299
  %v323 = vmul.f32 %v191, %v303
  %v324 = vadd.f32 %v269, %v308
  %v325 = vadd.f32 %v270, %v309
  %v326 = vadd.f32 %v271, %v310
  %v327 = vadd.f32 %v272, %v311
  %v328 = vadd.f32 %v273, %v312
  %v329 = vadd.f32 %v274, %v313
  %v330 = vadd.f32 %v275, %v314
  %v331 = vadd.f32 %v276, %v315
  %v332 = vadd.f32 %v277, %v316
  %v333 = vadd.f32 %v278, %v317
  %v334 = vadd.f32 %v279, %v318
  %v335 = vadd.f32 %v280, %v319
  %v336 = vadd.f32 %v281, %v320
  %v337 = vadd.f32 %v282, %v321
  %v338 = vadd.f32 %v283, %v322
  %v339 = vadd.f32 %v284, %v323
  %340 = vrot.lane.b32.xlu0 %v20, 32
  %v341 = vpop.permute.xlu0 %340
  %342 = vrot.lane.b32.xlu0 %v24, 32
  %v343 = vpop.permute.xlu0 %342
  %344 = vrot.lane.b32.xlu0 %v28, 32
  %v345 = vpop.permute.xlu0 %344
  %346 = vrot.lane.b32.xlu0 %v32, 32
  %v347 = vpop.permute.xlu0 %346
  %348 = vrot.lane.b32.xlu0 %v21, 32
  %v349 = vpop.permute.xlu0 %348
  %350 = vrot.lane.b32.xlu0 %v25, 32
  %v351 = vpop.permute.xlu0 %350
  %352 = vrot.lane.b32.xlu0 %v29, 32
  %v353 = vpop.permute.xlu0 %352
  %354 = vrot.lane.b32.xlu0 %v33, 32
  %v355 = vpop.permute.xlu0 %354
  %356 = vrot.lane.b32.xlu0 %v22, 32
  %v357 = vpop.permute.xlu0 %356
  %358 = vrot.lane.b32.xlu0 %v26, 32
  %v359 = vpop.permute.xlu0 %358
  %360 = vrot.lane.b32.xlu0 %v30, 32
  %v361 = vpop.permute.xlu0 %360
  %362 = vrot.lane.b32.xlu0 %v34, 32
  %v363 = vpop.permute.xlu0 %362
  %364 = vrot.lane.b32.xlu0 %v23, 32
  %v365 = vpop.permute.xlu0 %364
  %366 = vrot.lane.b32.xlu0 %v27, 32
  %v367 = vpop.permute.xlu0 %366
  %368 = vrot.lane.b32.xlu0 %v31, 32
  %v369 = vpop.permute.xlu0 %368
  %370 = vrot.lane.b32.xlu0 %v35, 32
  %v371 = vpop.permute.xlu0 %370
  %v372 = vsel %vm126, %v357, %v365
  %v373 = vsel %vm126, %v359, %v367
  %v374 = vsel %vm126, %v361, %v369
  %v375 = vsel %vm126, %v363, %v371
  %v376 = vsel %vm126, %v349, %v357
  %v377 = vsel %vm126, %v351, %v359
  %v378 = vsel %vm126, %v353, %v361
  %v379 = vsel %vm126, %v355, %v363
  %v380 = vsel %vm126, %v341, %v349
  %v381 = vsel %vm126, %v343, %v351
  %v382 = vsel %vm126, %v345, %v353
  %v383 = vsel %vm126, %v347, %v355
  %v384 = vsel %vm126, %v365, %v341
  %v385 = vsel %vm126, %v367, %v343
  %v386 = vsel %vm126, %v369, %v345
  %v387 = vsel %vm126, %v371, %v347
  %388 = vrot.lane.b32.xlu0 %v20, 96
  %v389 = vpop.permute.xlu0 %388
  %390 = vrot.lane.b32.xlu0 %v24, 96
  %v391 = vpop.permute.xlu0 %390
  %392 = vrot.lane.b32.xlu0 %v28, 96
  %v393 = vpop.permute.xlu0 %392
  %394 = vrot.lane.b32.xlu0 %v32, 96
  %v395 = vpop.permute.xlu0 %394
  %396 = vrot.lane.b32.xlu0 %v21, 96
  %v397 = vpop.permute.xlu0 %396
  %398 = vrot.lane.b32.xlu0 %v25, 96
  %v399 = vpop.permute.xlu0 %398
  %400 = vrot.lane.b32.xlu0 %v29, 96
  %v401 = vpop.permute.xlu0 %400
  %402 = vrot.lane.b32.xlu0 %v33, 96
  %v403 = vpop.permute.xlu0 %402
  %404 = vrot.lane.b32.xlu0 %v22, 96
  %v405 = vpop.permute.xlu0 %404
  %406 = vrot.lane.b32.xlu0 %v26, 96
  %v407 = vpop.permute.xlu0 %406
  %408 = vrot.lane.b32.xlu0 %v30, 96
  %v409 = vpop.permute.xlu0 %408
  %410 = vrot.lane.b32.xlu0 %v34, 96
  %v411 = vpop.permute.xlu0 %410
  %412 = vrot.lane.b32.xlu0 %v23, 96
  %v413 = vpop.permute.xlu0 %412
  %414 = vrot.lane.b32.xlu0 %v27, 96
  %v415 = vpop.permute.xlu0 %414
  %416 = vrot.lane.b32.xlu0 %v31, 96
  %v417 = vpop.permute.xlu0 %416
  %418 = vrot.lane.b32.xlu0 %v35, 96
  %v419 = vpop.permute.xlu0 %418
  %v420 = vsel %vm175, %v405, %v413
  %v421 = vsel %vm175, %v407, %v415
  %v422 = vsel %vm175, %v409, %v417
  %v423 = vsel %vm175, %v411, %v419
  %v424 = vsel %vm175, %v397, %v405
  %v425 = vsel %vm175, %v399, %v407
  %v426 = vsel %vm175, %v401, %v409
  %v427 = vsel %vm175, %v403, %v411
  %v428 = vsel %vm175, %v389, %v397
  %v429 = vsel %vm175, %v391, %v399
  %v430 = vsel %vm175, %v393, %v401
  %v431 = vsel %vm175, %v395, %v403
  %v432 = vsel %vm175, %v413, %v389
  %v433 = vsel %vm175, %v415, %v391
  %v434 = vsel %vm175, %v417, %v393
  %v435 = vsel %vm175, %v419, %v395
  %s436 = scalar_lea.vmem %s1, 3
  %v437 = vld [vmem:[%s436] ss:$8 sm:$0xf]
  %v439 = vlaneseq
  %v440 = vshrl.u32 %v439, 7
  %v441 = vsub.s32 0, %v440
  %v442 = vrot.slane %v437, %v441
  %v443 = vlaneseq
  %v444 = vshrl.u32 %v443, 7
  %v445 = vsub.s32 1, %v444
  %v446 = vrot.slane %v437, %v445
  %v447 = vlaneseq
  %v448 = vshrl.u32 %v447, 7
  %v449 = vsub.s32 2, %v448
  %v450 = vrot.slane %v437, %v449
  %v451 = vlaneseq
  %v452 = vshrl.u32 %v451, 7
  %v453 = vsub.s32 3, %v452
  %v454 = vrot.slane %v437, %v453
  %v459 = vmul.f32 %v384, %v442
  %v460 = vmul.f32 %v380, %v446
  %v461 = vmul.f32 %v376, %v450
  %v462 = vmul.f32 %v372, %v454
  %v463 = vmul.f32 %v385, %v442
  %v464 = vmul.f32 %v381, %v446
  %v465 = vmul.f32 %v377, %v450
  %v466 = vmul.f32 %v373, %v454
  %v467 = vmul.f32 %v386, %v442
  %v468 = vmul.f32 %v382, %v446
  %v469 = vmul.f32 %v378, %v450
  %v470 = vmul.f32 %v374, %v454
  %v471 = vmul.f32 %v387, %v442
  %v472 = vmul.f32 %v383, %v446
  %v473 = vmul.f32 %v379, %v450
  %v474 = vmul.f32 %v375, %v454
  %s475 = scalar_lea.vmem %s1, 4
  %v476 = vld [vmem:[%s475] ss:$8 sm:$0xf]
  %v478 = vlaneseq
  %v479 = vshrl.u32 %v478, 7
  %v480 = vsub.s32 0, %v479
  %v481 = vrot.slane %v476, %v480
  %v482 = vlaneseq
  %v483 = vshrl.u32 %v482, 7
  %v484 = vsub.s32 1, %v483
  %v485 = vrot.slane %v476, %v484
  %v486 = vlaneseq
  %v487 = vshrl.u32 %v486, 7
  %v488 = vsub.s32 2, %v487
  %v489 = vrot.slane %v476, %v488
  %v490 = vlaneseq
  %v491 = vshrl.u32 %v490, 7
  %v492 = vsub.s32 3, %v491
  %v493 = vrot.slane %v476, %v492
  %v498 = vmul.f32 %v20, %v481
  %v499 = vmul.f32 %v21, %v485
  %v500 = vmul.f32 %v22, %v489
  %v501 = vmul.f32 %v23, %v493
  %v502 = vmul.f32 %v24, %v481
  %v503 = vmul.f32 %v25, %v485
  %v504 = vmul.f32 %v26, %v489
  %v505 = vmul.f32 %v27, %v493
  %v506 = vmul.f32 %v28, %v481
  %v507 = vmul.f32 %v29, %v485
  %v508 = vmul.f32 %v30, %v489
  %v509 = vmul.f32 %v31, %v493
  %v510 = vmul.f32 %v32, %v481
  %v511 = vmul.f32 %v33, %v485
  %v512 = vmul.f32 %v34, %v489
  %v513 = vmul.f32 %v35, %v493
  %v514 = vadd.f32 %v459, %v498
  %v515 = vadd.f32 %v460, %v499
  %v516 = vadd.f32 %v461, %v500
  %v517 = vadd.f32 %v462, %v501
  %v518 = vadd.f32 %v463, %v502
  %v519 = vadd.f32 %v464, %v503
  %v520 = vadd.f32 %v465, %v504
  %v521 = vadd.f32 %v466, %v505
  %v522 = vadd.f32 %v467, %v506
  %v523 = vadd.f32 %v468, %v507
  %v524 = vadd.f32 %v469, %v508
  %v525 = vadd.f32 %v470, %v509
  %v526 = vadd.f32 %v471, %v510
  %v527 = vadd.f32 %v472, %v511
  %v528 = vadd.f32 %v473, %v512
  %v529 = vadd.f32 %v474, %v513
  %s530 = scalar_lea.vmem %s1, 5
  %v531 = vld [vmem:[%s530] ss:$8 sm:$0xf]
  %v533 = vlaneseq
  %v534 = vshrl.u32 %v533, 7
  %v535 = vsub.s32 0, %v534
  %v536 = vrot.slane %v531, %v535
  %v537 = vlaneseq
  %v538 = vshrl.u32 %v537, 7
  %v539 = vsub.s32 1, %v538
  %v540 = vrot.slane %v531, %v539
  %v541 = vlaneseq
  %v542 = vshrl.u32 %v541, 7
  %v543 = vsub.s32 2, %v542
  %v544 = vrot.slane %v531, %v543
  %v545 = vlaneseq
  %v546 = vshrl.u32 %v545, 7
  %v547 = vsub.s32 3, %v546
  %v548 = vrot.slane %v531, %v547
  %v553 = vmul.f32 %v428, %v536
  %v554 = vmul.f32 %v424, %v540
  %v555 = vmul.f32 %v420, %v544
  %v556 = vmul.f32 %v432, %v548
  %v557 = vmul.f32 %v429, %v536
  %v558 = vmul.f32 %v425, %v540
  %v559 = vmul.f32 %v421, %v544
  %v560 = vmul.f32 %v433, %v548
  %v561 = vmul.f32 %v430, %v536
  %v562 = vmul.f32 %v426, %v540
  %v563 = vmul.f32 %v422, %v544
  %v564 = vmul.f32 %v434, %v548
  %v565 = vmul.f32 %v431, %v536
  %v566 = vmul.f32 %v427, %v540
  %v567 = vmul.f32 %v423, %v544
  %v568 = vmul.f32 %v435, %v548
  %v569 = vadd.f32 %v514, %v553
  %v570 = vadd.f32 %v515, %v554
  %v571 = vadd.f32 %v516, %v555
  %v572 = vadd.f32 %v517, %v556
  %v573 = vadd.f32 %v518, %v557
  %v574 = vadd.f32 %v519, %v558
  %v575 = vadd.f32 %v520, %v559
  %v576 = vadd.f32 %v521, %v560
  %v577 = vadd.f32 %v522, %v561
  %v578 = vadd.f32 %v523, %v562
  %v579 = vadd.f32 %v524, %v563
  %v580 = vadd.f32 %v525, %v564
  %v581 = vadd.f32 %v526, %v565
  %v582 = vadd.f32 %v527, %v566
  %v583 = vadd.f32 %v528, %v567
  %v584 = vadd.f32 %v529, %v568
  %v585 = vadd.f32 %v324, %v569
  %v586 = vadd.f32 %v325, %v570
  %v587 = vadd.f32 %v326, %v571
  %v588 = vadd.f32 %v327, %v572
  %v589 = vadd.f32 %v328, %v573
  %v590 = vadd.f32 %v329, %v574
  %v591 = vadd.f32 %v330, %v575
  %v592 = vadd.f32 %v331, %v576
  %v593 = vadd.f32 %v332, %v577
  %v594 = vadd.f32 %v333, %v578
  %v595 = vadd.f32 %v334, %v579
  %v596 = vadd.f32 %v335, %v580
  %v597 = vadd.f32 %v336, %v581
  %v598 = vadd.f32 %v337, %v582
  %v599 = vadd.f32 %v338, %v583
  %v600 = vadd.f32 %v339, %v584
  %v601 = vrot.slane %v20, 1
  %v602 = vrot.slane %v21, 1
  %v603 = vrot.slane %v22, 1
  %v604 = vrot.slane %v23, 1
  %v605 = vrot.slane %v24, 1
  %v606 = vrot.slane %v25, 1
  %v607 = vrot.slane %v26, 1
  %v608 = vrot.slane %v27, 1
  %v609 = vrot.slane %v28, 1
  %v610 = vrot.slane %v29, 1
  %v611 = vrot.slane %v30, 1
  %v612 = vrot.slane %v31, 1
  %v613 = vrot.slane %v32, 1
  %v614 = vrot.slane %v33, 1
  %v615 = vrot.slane %v34, 1
  %v616 = vrot.slane %v35, 1
  %vm617 = vcmp.lt.s32.totalorder %v37, 7
  %v618 = vsel %vm617, %v609, %v613
  %v619 = vsel %vm617, %v610, %v614
  %v620 = vsel %vm617, %v611, %v615
  %v621 = vsel %vm617, %v612, %v616
  %v622 = vsel %vm617, %v605, %v609
  %v623 = vsel %vm617, %v606, %v610
  %v624 = vsel %vm617, %v607, %v611
  %v625 = vsel %vm617, %v608, %v612
  %v626 = vsel %vm617, %v601, %v605
  %v627 = vsel %vm617, %v602, %v606
  %v628 = vsel %vm617, %v603, %v607
  %v629 = vsel %vm617, %v604, %v608
  %v630 = vsel %vm617, %v613, %v601
  %v631 = vsel %vm617, %v614, %v602
  %v632 = vsel %vm617, %v615, %v603
  %v633 = vsel %vm617, %v616, %v604
  %v634 = vsel %vm41, %v626, 0.0
  %v635 = vsel %vm41, %v627, 0.0
  %v636 = vsel %vm41, %v628, 0.0
  %v637 = vsel %vm41, %v629, 0.0
  %v638 = vsel %vm42, %v622, 0.0
  %v639 = vsel %vm42, %v623, 0.0
  %v640 = vsel %vm42, %v624, 0.0
  %v641 = vsel %vm42, %v625, 0.0
  %v642 = vsel %vm41, %v618, 0.0
  %v643 = vsel %vm41, %v619, 0.0
  %v644 = vsel %vm41, %v620, 0.0
  %v645 = vsel %vm41, %v621, 0.0
  %v646 = vsel %vm42, %v630, 0.0
  %v647 = vsel %vm42, %v631, 0.0
  %v648 = vsel %vm42, %v632, 0.0
  %v649 = vsel %vm42, %v633, 0.0
  %650 = vrot.lane.b32.xlu0 %v634, 32
  %v651 = vpop.permute.xlu0 %650
  %652 = vrot.lane.b32.xlu0 %v638, 32
  %v653 = vpop.permute.xlu0 %652
  %654 = vrot.lane.b32.xlu0 %v642, 32
  %v655 = vpop.permute.xlu0 %654
  %656 = vrot.lane.b32.xlu0 %v646, 32
  %v657 = vpop.permute.xlu0 %656
  %658 = vrot.lane.b32.xlu0 %v635, 32
  %v659 = vpop.permute.xlu0 %658
  %660 = vrot.lane.b32.xlu0 %v639, 32
  %v661 = vpop.permute.xlu0 %660
  %662 = vrot.lane.b32.xlu0 %v643, 32
  %v663 = vpop.permute.xlu0 %662
  %664 = vrot.lane.b32.xlu0 %v647, 32
  %v665 = vpop.permute.xlu0 %664
  %666 = vrot.lane.b32.xlu0 %v636, 32
  %v667 = vpop.permute.xlu0 %666
  %668 = vrot.lane.b32.xlu0 %v640, 32
  %v669 = vpop.permute.xlu0 %668
  %670 = vrot.lane.b32.xlu0 %v644, 32
  %v671 = vpop.permute.xlu0 %670
  %672 = vrot.lane.b32.xlu0 %v648, 32
  %v673 = vpop.permute.xlu0 %672
  %674 = vrot.lane.b32.xlu0 %v637, 32
  %v675 = vpop.permute.xlu0 %674
  %676 = vrot.lane.b32.xlu0 %v641, 32
  %v677 = vpop.permute.xlu0 %676
  %678 = vrot.lane.b32.xlu0 %v645, 32
  %v679 = vpop.permute.xlu0 %678
  %680 = vrot.lane.b32.xlu0 %v649, 32
  %v681 = vpop.permute.xlu0 %680
  %v682 = vsel %vm126, %v667, %v675
  %v683 = vsel %vm126, %v669, %v677
  %v684 = vsel %vm126, %v671, %v679
  %v685 = vsel %vm126, %v673, %v681
  %v686 = vsel %vm126, %v659, %v667
  %v687 = vsel %vm126, %v661, %v669
  %v688 = vsel %vm126, %v663, %v671
  %v689 = vsel %vm126, %v665, %v673
  %v690 = vsel %vm126, %v651, %v659
  %v691 = vsel %vm126, %v653, %v661
  %v692 = vsel %vm126, %v655, %v663
  %v693 = vsel %vm126, %v657, %v665
  %v694 = vsel %vm126, %v675, %v651
  %v695 = vsel %vm126, %v677, %v653
  %v696 = vsel %vm126, %v679, %v655
  %v697 = vsel %vm126, %v681, %v657
  %698 = vrot.lane.b32.xlu0 %v634, 96
  %v699 = vpop.permute.xlu0 %698
  %700 = vrot.lane.b32.xlu0 %v638, 96
  %v701 = vpop.permute.xlu0 %700
  %702 = vrot.lane.b32.xlu0 %v642, 96
  %v703 = vpop.permute.xlu0 %702
  %704 = vrot.lane.b32.xlu0 %v646, 96
  %v705 = vpop.permute.xlu0 %704
  %706 = vrot.lane.b32.xlu0 %v635, 96
  %v707 = vpop.permute.xlu0 %706
  %708 = vrot.lane.b32.xlu0 %v639, 96
  %v709 = vpop.permute.xlu0 %708
  %710 = vrot.lane.b32.xlu0 %v643, 96
  %v711 = vpop.permute.xlu0 %710
  %712 = vrot.lane.b32.xlu0 %v647, 96
  %v713 = vpop.permute.xlu0 %712
  %714 = vrot.lane.b32.xlu0 %v636, 96
  %v715 = vpop.permute.xlu0 %714
  %716 = vrot.lane.b32.xlu0 %v640, 96
  %v717 = vpop.permute.xlu0 %716
  %718 = vrot.lane.b32.xlu0 %v644, 96
  %v719 = vpop.permute.xlu0 %718
  %720 = vrot.lane.b32.xlu0 %v648, 96
  %v721 = vpop.permute.xlu0 %720
  %722 = vrot.lane.b32.xlu0 %v637, 96
  %v723 = vpop.permute.xlu0 %722
  %724 = vrot.lane.b32.xlu0 %v641, 96
  %v725 = vpop.permute.xlu0 %724
  %726 = vrot.lane.b32.xlu0 %v645, 96
  %v727 = vpop.permute.xlu0 %726
  %728 = vrot.lane.b32.xlu0 %v649, 96
  %v729 = vpop.permute.xlu0 %728
  %v730 = vsel %vm175, %v715, %v723
  %v731 = vsel %vm175, %v717, %v725
  %v732 = vsel %vm175, %v719, %v727
  %v733 = vsel %vm175, %v721, %v729
  %v734 = vsel %vm175, %v707, %v715
  %v735 = vsel %vm175, %v709, %v717
  %v736 = vsel %vm175, %v711, %v719
  %v737 = vsel %vm175, %v713, %v721
  %v738 = vsel %vm175, %v699, %v707
  %v739 = vsel %vm175, %v701, %v709
  %v740 = vsel %vm175, %v703, %v711
  %v741 = vsel %vm175, %v705, %v713
  %v742 = vsel %vm175, %v723, %v699
  %v743 = vsel %vm175, %v725, %v701
  %v744 = vsel %vm175, %v727, %v703
  %v745 = vsel %vm175, %v729, %v705
  %s746 = scalar_lea.vmem %s1, 6
  %v747 = vld [vmem:[%s746] ss:$8 sm:$0xf]
  %v749 = vlaneseq
  %v750 = vshrl.u32 %v749, 7
  %v751 = vsub.s32 0, %v750
  %v752 = vrot.slane %v747, %v751
  %v753 = vlaneseq
  %v754 = vshrl.u32 %v753, 7
  %v755 = vsub.s32 1, %v754
  %v756 = vrot.slane %v747, %v755
  %v757 = vlaneseq
  %v758 = vshrl.u32 %v757, 7
  %v759 = vsub.s32 2, %v758
  %v760 = vrot.slane %v747, %v759
  %v761 = vlaneseq
  %v762 = vshrl.u32 %v761, 7
  %v763 = vsub.s32 3, %v762
  %v764 = vrot.slane %v747, %v763
  %v769 = vmul.f32 %v694, %v752
  %v770 = vmul.f32 %v690, %v756
  %v771 = vmul.f32 %v686, %v760
  %v772 = vmul.f32 %v682, %v764
  %v773 = vmul.f32 %v695, %v752
  %v774 = vmul.f32 %v691, %v756
  %v775 = vmul.f32 %v687, %v760
  %v776 = vmul.f32 %v683, %v764
  %v777 = vmul.f32 %v696, %v752
  %v778 = vmul.f32 %v692, %v756
  %v779 = vmul.f32 %v688, %v760
  %v780 = vmul.f32 %v684, %v764
  %v781 = vmul.f32 %v697, %v752
  %v782 = vmul.f32 %v693, %v756
  %v783 = vmul.f32 %v689, %v760
  %v784 = vmul.f32 %v685, %v764
  %s785 = scalar_lea.vmem %s1, 7
  %v786 = vld [vmem:[%s785] ss:$8 sm:$0xf]
  %v788 = vlaneseq
  %v789 = vshrl.u32 %v788, 7
  %v790 = vsub.s32 0, %v789
  %v791 = vrot.slane %v786, %v790
  %v792 = vlaneseq
  %v793 = vshrl.u32 %v792, 7
  %v794 = vsub.s32 1, %v793
  %v795 = vrot.slane %v786, %v794
  %v796 = vlaneseq
  %v797 = vshrl.u32 %v796, 7
  %v798 = vsub.s32 2, %v797
  %v799 = vrot.slane %v786, %v798
  %v800 = vlaneseq
  %v801 = vshrl.u32 %v800, 7
  %v802 = vsub.s32 3, %v801
  %v803 = vrot.slane %v786, %v802
  %v808 = vmul.f32 %v634, %v791
  %v809 = vmul.f32 %v635, %v795
  %v810 = vmul.f32 %v636, %v799
  %v811 = vmul.f32 %v637, %v803
  %v812 = vmul.f32 %v638, %v791
  %v813 = vmul.f32 %v639, %v795
  %v814 = vmul.f32 %v640, %v799
  %v815 = vmul.f32 %v641, %v803
  %v816 = vmul.f32 %v642, %v791
  %v817 = vmul.f32 %v643, %v795
  %v818 = vmul.f32 %v644, %v799
  %v819 = vmul.f32 %v645, %v803
  %v820 = vmul.f32 %v646, %v791
  %v821 = vmul.f32 %v647, %v795
  %v822 = vmul.f32 %v648, %v799
  %v823 = vmul.f32 %v649, %v803
  %v824 = vadd.f32 %v769, %v808
  %v825 = vadd.f32 %v770, %v809
  %v826 = vadd.f32 %v771, %v810
  %v827 = vadd.f32 %v772, %v811
  %v828 = vadd.f32 %v773, %v812
  %v829 = vadd.f32 %v774, %v813
  %v830 = vadd.f32 %v775, %v814
  %v831 = vadd.f32 %v776, %v815
  %v832 = vadd.f32 %v777, %v816
  %v833 = vadd.f32 %v778, %v817
  %v834 = vadd.f32 %v779, %v818
  %v835 = vadd.f32 %v780, %v819
  %v836 = vadd.f32 %v781, %v820
  %v837 = vadd.f32 %v782, %v821
  %v838 = vadd.f32 %v783, %v822
  %v839 = vadd.f32 %v784, %v823
  %s840 = scalar_lea.vmem %s1, 32
  %v841 = vld [vmem:[%s840] ss:$8 sm:$0xf]
  %v843 = vlaneseq
  %v844 = vshrl.u32 %v843, 7
  %v845 = vsub.s32 0, %v844
  %v846 = vrot.slane %v841, %v845
  %v847 = vlaneseq
  %v848 = vshrl.u32 %v847, 7
  %v849 = vsub.s32 1, %v848
  %v850 = vrot.slane %v841, %v849
  %v851 = vlaneseq
  %v852 = vshrl.u32 %v851, 7
  %v853 = vsub.s32 2, %v852
  %v854 = vrot.slane %v841, %v853
  %v855 = vlaneseq
  %v856 = vshrl.u32 %v855, 7
  %v857 = vsub.s32 3, %v856
  %v858 = vrot.slane %v841, %v857
  %v863 = vmul.f32 %v738, %v846
  %v864 = vmul.f32 %v734, %v850
  %v865 = vmul.f32 %v730, %v854
  %v866 = vmul.f32 %v742, %v858
  %v867 = vmul.f32 %v739, %v846
  %v868 = vmul.f32 %v735, %v850
  %v869 = vmul.f32 %v731, %v854
  %v870 = vmul.f32 %v743, %v858
  %v871 = vmul.f32 %v740, %v846
  %v872 = vmul.f32 %v736, %v850
  %v873 = vmul.f32 %v732, %v854
  %v874 = vmul.f32 %v744, %v858
  %v875 = vmul.f32 %v741, %v846
  %v876 = vmul.f32 %v737, %v850
  %v877 = vmul.f32 %v733, %v854
  %v878 = vmul.f32 %v745, %v858
  %v879 = vadd.f32 %v824, %v863
  %v880 = vadd.f32 %v825, %v864
  %v881 = vadd.f32 %v826, %v865
  %v882 = vadd.f32 %v827, %v866
  %v883 = vadd.f32 %v828, %v867
  %v884 = vadd.f32 %v829, %v868
  %v885 = vadd.f32 %v830, %v869
  %v886 = vadd.f32 %v831, %v870
  %v887 = vadd.f32 %v832, %v871
  %v888 = vadd.f32 %v833, %v872
  %v889 = vadd.f32 %v834, %v873
  %v890 = vadd.f32 %v835, %v874
  %v891 = vadd.f32 %v836, %v875
  %v892 = vadd.f32 %v837, %v876
  %v893 = vadd.f32 %v838, %v877
  %v894 = vadd.f32 %v839, %v878
  %v895 = vadd.f32 %v585, %v879
  %v896 = vadd.f32 %v586, %v880
  %v897 = vadd.f32 %v587, %v881
  %v898 = vadd.f32 %v588, %v882
  %v899 = vadd.f32 %v589, %v883
  %v900 = vadd.f32 %v590, %v884
  %v901 = vadd.f32 %v591, %v885
  %v902 = vadd.f32 %v592, %v886
  %v903 = vadd.f32 %v593, %v887
  %v904 = vadd.f32 %v594, %v888
  %v905 = vadd.f32 %v595, %v889
  %v906 = vadd.f32 %v596, %v890
  %v907 = vadd.f32 %v597, %v891
  %v908 = vadd.f32 %v598, %v892
  %v909 = vadd.f32 %v599, %v893
  %v910 = vadd.f32 %v600, %v894
  %v911 = vld [vmem:[%s2] sm:$0xf]
  %v913 = vlaneseq
  %v914 = vshrl.u32 %v913, 7
  %v915 = vsub.s32 0, %v914
  %v916 = vrot.slane %v911, %v915
  %v917 = vlaneseq
  %v918 = vshrl.u32 %v917, 7
  %v919 = vsub.s32 1, %v918
  %v920 = vrot.slane %v911, %v919
  %v921 = vlaneseq
  %v922 = vshrl.u32 %v921, 7
  %v923 = vsub.s32 2, %v922
  %v924 = vrot.slane %v911, %v923
  %v925 = vlaneseq
  %v926 = vshrl.u32 %v925, 7
  %v927 = vsub.s32 3, %v926
  %v928 = vrot.slane %v911, %v927
  %v933 = vadd.f32 %v895, %v916
  %v934 = vadd.f32 %v896, %v920
  %v935 = vadd.f32 %v897, %v924
  %v936 = vadd.f32 %v898, %v928
  %v937 = vadd.f32 %v899, %v916
  %v938 = vadd.f32 %v900, %v920
  %v939 = vadd.f32 %v901, %v924
  %v940 = vadd.f32 %v902, %v928
  %v941 = vadd.f32 %v903, %v916
  %v942 = vadd.f32 %v904, %v920
  %v943 = vadd.f32 %v905, %v924
  %v944 = vadd.f32 %v906, %v928
  %v945 = vadd.f32 %v907, %v916
  %v946 = vadd.f32 %v908, %v920
  %v947 = vadd.f32 %v909, %v924
  %v948 = vadd.f32 %v910, %v928
  %v949 = vmax.f32 %v933, 0.0
  %v950 = vmax.f32 %v934, 0.0
  %v951 = vmax.f32 %v935, 0.0
  %v952 = vmax.f32 %v936, 0.0
  %v953 = vmax.f32 %v937, 0.0
  %v954 = vmax.f32 %v938, 0.0
  %v955 = vmax.f32 %v939, 0.0
  %v956 = vmax.f32 %v940, 0.0
  %v957 = vmax.f32 %v941, 0.0
  %v958 = vmax.f32 %v942, 0.0
  %v959 = vmax.f32 %v943, 0.0
  %v960 = vmax.f32 %v944, 0.0
  %v961 = vmax.f32 %v945, 0.0
  %v962 = vmax.f32 %v946, 0.0
  %v963 = vmax.f32 %v947, 0.0
  %v964 = vmax.f32 %v948, 0.0
  %v965 = vrot.slane %v949, 7
  %v966 = vrot.slane %v950, 7
  %v967 = vrot.slane %v951, 7
  %v968 = vrot.slane %v952, 7
  %v969 = vrot.slane %v953, 7
  %v970 = vrot.slane %v954, 7
  %v971 = vrot.slane %v955, 7
  %v972 = vrot.slane %v956, 7
  %v973 = vrot.slane %v957, 7
  %v974 = vrot.slane %v958, 7
  %v975 = vrot.slane %v959, 7
  %v976 = vrot.slane %v960, 7
  %v977 = vrot.slane %v961, 7
  %v978 = vrot.slane %v962, 7
  %v979 = vrot.slane %v963, 7
  %v980 = vrot.slane %v964, 7
  %v981 = vsel %vm59, %v973, %v977
  %v982 = vsel %vm59, %v974, %v978
  %v983 = vsel %vm59, %v975, %v979
  %v984 = vsel %vm59, %v976, %v980
  %v985 = vsel %vm59, %v969, %v973
  %v986 = vsel %vm59, %v970, %v974
  %v987 = vsel %vm59, %v971, %v975
  %v988 = vsel %vm59, %v972, %v976
  %v989 = vsel %vm59, %v965, %v969
  %v990 = vsel %vm59, %v966, %v970
  %v991 = vsel %vm59, %v967, %v971
  %v992 = vsel %vm59, %v968, %v972
  %v993 = vsel %vm59, %v977, %v965
  %v994 = vsel %vm59, %v978, %v966
  %v995 = vsel %vm59, %v979, %v967
  %v996 = vsel %vm59, %v980, %v968
  %v997 = vsel %vm39, %v993, 0.0
  %v998 = vsel %vm39, %v994, 0.0
  %v999 = vsel %vm39, %v995, 0.0
  %v1000 = vsel %vm39, %v996, 0.0
  %v1001 = vsel %vm40, %v989, 0.0
  %v1002 = vsel %vm40, %v990, 0.0
  %v1003 = vsel %vm40, %v991, 0.0
  %v1004 = vsel %vm40, %v992, 0.0
  %v1005 = vsel %vm39, %v985, 0.0
  %v1006 = vsel %vm39, %v986, 0.0
  %v1007 = vsel %vm39, %v987, 0.0
  %v1008 = vsel %vm39, %v988, 0.0
  %v1009 = vsel %vm40, %v981, 0.0
  %v1010 = vsel %vm40, %v982, 0.0
  %v1011 = vsel %vm40, %v983, 0.0
  %v1012 = vsel %vm40, %v984, 0.0
  %1013 = vrot.lane.b32.xlu0 %v997, 32
  %v1014 = vpop.permute.xlu0 %1013
  %1015 = vrot.lane.b32.xlu0 %v1001, 32
  %v1016 = vpop.permute.xlu0 %1015
  %1017 = vrot.lane.b32.xlu0 %v1005, 32
  %v1018 = vpop.permute.xlu0 %1017
  %1019 = vrot.lane.b32.xlu0 %v1009, 32
  %v1020 = vpop.permute.xlu0 %1019
  %1021 = vrot.lane.b32.xlu0 %v998, 32
  %v1022 = vpop.permute.xlu0 %1021
  %1023 = vrot.lane.b32.xlu0 %v1002, 32
  %v1024 = vpop.permute.xlu0 %1023
  %1025 = vrot.lane.b32.xlu0 %v1006, 32
  %v1026 = vpop.permute.xlu0 %1025
  %1027 = vrot.lane.b32.xlu0 %v1010, 32
  %v1028 = vpop.permute.xlu0 %1027
  %1029 = vrot.lane.b32.xlu0 %v999, 32
  %v1030 = vpop.permute.xlu0 %1029
  %1031 = vrot.lane.b32.xlu0 %v1003, 32
  %v1032 = vpop.permute.xlu0 %1031
  %1033 = vrot.lane.b32.xlu0 %v1007, 32
  %v1034 = vpop.permute.xlu0 %1033
  %1035 = vrot.lane.b32.xlu0 %v1011, 32
  %v1036 = vpop.permute.xlu0 %1035
  %1037 = vrot.lane.b32.xlu0 %v1000, 32
  %v1038 = vpop.permute.xlu0 %1037
  %1039 = vrot.lane.b32.xlu0 %v1004, 32
  %v1040 = vpop.permute.xlu0 %1039
  %1041 = vrot.lane.b32.xlu0 %v1008, 32
  %v1042 = vpop.permute.xlu0 %1041
  %1043 = vrot.lane.b32.xlu0 %v1012, 32
  %v1044 = vpop.permute.xlu0 %1043
  %v1045 = vsel %vm126, %v1030, %v1038
  %v1046 = vsel %vm126, %v1032, %v1040
  %v1047 = vsel %vm126, %v1034, %v1042
  %v1048 = vsel %vm126, %v1036, %v1044
  %v1049 = vsel %vm126, %v1022, %v1030
  %v1050 = vsel %vm126, %v1024, %v1032
  %v1051 = vsel %vm126, %v1026, %v1034
  %v1052 = vsel %vm126, %v1028, %v1036
  %v1053 = vsel %vm126, %v1014, %v1022
  %v1054 = vsel %vm126, %v1016, %v1024
  %v1055 = vsel %vm126, %v1018, %v1026
  %v1056 = vsel %vm126, %v1020, %v1028
  %v1057 = vsel %vm126, %v1038, %v1014
  %v1058 = vsel %vm126, %v1040, %v1016
  %v1059 = vsel %vm126, %v1042, %v1018
  %v1060 = vsel %vm126, %v1044, %v1020
  %1061 = vrot.lane.b32.xlu0 %v997, 96
  %v1062 = vpop.permute.xlu0 %1061
  %1063 = vrot.lane.b32.xlu0 %v1001, 96
  %v1064 = vpop.permute.xlu0 %1063
  %1065 = vrot.lane.b32.xlu0 %v1005, 96
  %v1066 = vpop.permute.xlu0 %1065
  %1067 = vrot.lane.b32.xlu0 %v1009, 96
  %v1068 = vpop.permute.xlu0 %1067
  %1069 = vrot.lane.b32.xlu0 %v998, 96
  %v1070 = vpop.permute.xlu0 %1069
  %1071 = vrot.lane.b32.xlu0 %v1002, 96
  %v1072 = vpop.permute.xlu0 %1071
  %1073 = vrot.lane.b32.xlu0 %v1006, 96
  %v1074 = vpop.permute.xlu0 %1073
  %1075 = vrot.lane.b32.xlu0 %v1010, 96
  %v1076 = vpop.permute.xlu0 %1075
  %1077 = vrot.lane.b32.xlu0 %v999, 96
  %v1078 = vpop.permute.xlu0 %1077
  %1079 = vrot.lane.b32.xlu0 %v1003, 96
  %v1080 = vpop.permute.xlu0 %1079
  %1081 = vrot.lane.b32.xlu0 %v1007, 96
  %v1082 = vpop.permute.xlu0 %1081
  %1083 = vrot.lane.b32.xlu0 %v1011, 96
  %v1084 = vpop.permute.xlu0 %1083
  %1085 = vrot.lane.b32.xlu0 %v1000, 96
  %v1086 = vpop.permute.xlu0 %1085
  %1087 = vrot.lane.b32.xlu0 %v1004, 96
  %v1088 = vpop.permute.xlu0 %1087
  %1089 = vrot.lane.b32.xlu0 %v1008, 96
  %v1090 = vpop.permute.xlu0 %1089
  %1091 = vrot.lane.b32.xlu0 %v1012, 96
  %v1092 = vpop.permute.xlu0 %1091
  %v1093 = vsel %vm175, %v1078, %v1086
  %v1094 = vsel %vm175, %v1080, %v1088
  %v1095 = vsel %vm175, %v1082, %v1090
  %v1096 = vsel %vm175, %v1084, %v1092
  %v1097 = vsel %vm175, %v1070, %v1078
  %v1098 = vsel %vm175, %v1072, %v1080
  %v1099 = vsel %vm175, %v1074, %v1082
  %v1100 = vsel %vm175, %v1076, %v1084
  %v1101 = vsel %vm175, %v1062, %v1070
  %v1102 = vsel %vm175, %v1064, %v1072
  %v1103 = vsel %vm175, %v1066, %v1074
  %v1104 = vsel %vm175, %v1068, %v1076
  %v1105 = vsel %vm175, %v1086, %v1062
  %v1106 = vsel %vm175, %v1088, %v1064
  %v1107 = vsel %vm175, %v1090, %v1066
  %v1108 = vsel %vm175, %v1092, %v1068
  %v1109 = vld [vmem:[%s3] ss:$8 sm:$0xf]
  %v1111 = vlaneseq
  %v1112 = vshrl.u32 %v1111, 7
  %v1113 = vsub.s32 0, %v1112
  %v1114 = vrot.slane %v1109, %v1113
  %v1115 = vlaneseq
  %v1116 = vshrl.u32 %v1115, 7
  %v1117 = vsub.s32 1, %v1116
  %v1118 = vrot.slane %v1109, %v1117
  %v1119 = vlaneseq
  %v1120 = vshrl.u32 %v1119, 7
  %v1121 = vsub.s32 2, %v1120
  %v1122 = vrot.slane %v1109, %v1121
  %v1123 = vlaneseq
  %v1124 = vshrl.u32 %v1123, 7
  %v1125 = vsub.s32 3, %v1124
  %v1126 = vrot.slane %v1109, %v1125
  %v1131 = vmul.f32 %v1057, %v1114
  %v1132 = vmul.f32 %v1053, %v1118
  %v1133 = vmul.f32 %v1049, %v1122
  %v1134 = vmul.f32 %v1045, %v1126
  %v1135 = vmul.f32 %v1058, %v1114
  %v1136 = vmul.f32 %v1054, %v1118
  %v1137 = vmul.f32 %v1050, %v1122
  %v1138 = vmul.f32 %v1046, %v1126
  %v1139 = vmul.f32 %v1059, %v1114
  %v1140 = vmul.f32 %v1055, %v1118
  %v1141 = vmul.f32 %v1051, %v1122
  %v1142 = vmul.f32 %v1047, %v1126
  %v1143 = vmul.f32 %v1060, %v1114
  %v1144 = vmul.f32 %v1056, %v1118
  %v1145 = vmul.f32 %v1052, %v1122
  %v1146 = vmul.f32 %v1048, %v1126
  %s1147 = scalar_lea.vmem %s3, 1
  %v1148 = vld [vmem:[%s1147] ss:$8 sm:$0xf]
  %v1150 = vlaneseq
  %v1151 = vshrl.u32 %v1150, 7
  %v1152 = vsub.s32 0, %v1151
  %v1153 = vrot.slane %v1148, %v1152
  %v1154 = vlaneseq
  %v1155 = vshrl.u32 %v1154, 7
  %v1156 = vsub.s32 1, %v1155
  %v1157 = vrot.slane %v1148, %v1156
  %v1158 = vlaneseq
  %v1159 = vshrl.u32 %v1158, 7
  %v1160 = vsub.s32 2, %v1159
  %v1161 = vrot.slane %v1148, %v1160
  %v1162 = vlaneseq
  %v1163 = vshrl.u32 %v1162, 7
  %v1164 = vsub.s32 3, %v1163
  %v1165 = vrot.slane %v1148, %v1164
  %v1170 = vmul.f32 %v997, %v1153
  %v1171 = vmul.f32 %v998, %v1157
  %v1172 = vmul.f32 %v999, %v1161
  %v1173 = vmul.f32 %v1000, %v1165
  %v1174 = vmul.f32 %v1001, %v1153
  %v1175 = vmul.f32 %v1002, %v1157
  %v1176 = vmul.f32 %v1003, %v1161
  %v1177 = vmul.f32 %v1004, %v1165
  %v1178 = vmul.f32 %v1005, %v1153
  %v1179 = vmul.f32 %v1006, %v1157
  %v1180 = vmul.f32 %v1007, %v1161
  %v1181 = vmul.f32 %v1008, %v1165
  %v1182 = vmul.f32 %v1009, %v1153
  %v1183 = vmul.f32 %v1010, %v1157
  %v1184 = vmul.f32 %v1011, %v1161
  %v1185 = vmul.f32 %v1012, %v1165
  %v1186 = vadd.f32 %v1131, %v1170
  %v1187 = vadd.f32 %v1132, %v1171
  %v1188 = vadd.f32 %v1133, %v1172
  %v1189 = vadd.f32 %v1134, %v1173
  %v1190 = vadd.f32 %v1135, %v1174
  %v1191 = vadd.f32 %v1136, %v1175
  %v1192 = vadd.f32 %v1137, %v1176
  %v1193 = vadd.f32 %v1138, %v1177
  %v1194 = vadd.f32 %v1139, %v1178
  %v1195 = vadd.f32 %v1140, %v1179
  %v1196 = vadd.f32 %v1141, %v1180
  %v1197 = vadd.f32 %v1142, %v1181
  %v1198 = vadd.f32 %v1143, %v1182
  %v1199 = vadd.f32 %v1144, %v1183
  %v1200 = vadd.f32 %v1145, %v1184
  %v1201 = vadd.f32 %v1146, %v1185
  %s1202 = scalar_lea.vmem %s3, 2
  %v1203 = vld [vmem:[%s1202] ss:$8 sm:$0xf]
  %v1205 = vlaneseq
  %v1206 = vshrl.u32 %v1205, 7
  %v1207 = vsub.s32 0, %v1206
  %v1208 = vrot.slane %v1203, %v1207
  %v1209 = vlaneseq
  %v1210 = vshrl.u32 %v1209, 7
  %v1211 = vsub.s32 1, %v1210
  %v1212 = vrot.slane %v1203, %v1211
  %v1213 = vlaneseq
  %v1214 = vshrl.u32 %v1213, 7
  %v1215 = vsub.s32 2, %v1214
  %v1216 = vrot.slane %v1203, %v1215
  %v1217 = vlaneseq
  %v1218 = vshrl.u32 %v1217, 7
  %v1219 = vsub.s32 3, %v1218
  %v1220 = vrot.slane %v1203, %v1219
  %v1225 = vmul.f32 %v1101, %v1208
  %v1226 = vmul.f32 %v1097, %v1212
  %v1227 = vmul.f32 %v1093, %v1216
  %v1228 = vmul.f32 %v1105, %v1220
  %v1229 = vmul.f32 %v1102, %v1208
  %v1230 = vmul.f32 %v1098, %v1212
  %v1231 = vmul.f32 %v1094, %v1216
  %v1232 = vmul.f32 %v1106, %v1220
  %v1233 = vmul.f32 %v1103, %v1208
  %v1234 = vmul.f32 %v1099, %v1212
  %v1235 = vmul.f32 %v1095, %v1216
  %v1236 = vmul.f32 %v1107, %v1220
  %v1237 = vmul.f32 %v1104, %v1208
  %v1238 = vmul.f32 %v1100, %v1212
  %v1239 = vmul.f32 %v1096, %v1216
  %v1240 = vmul.f32 %v1108, %v1220
  %v1241 = vadd.f32 %v1186, %v1225
  %v1242 = vadd.f32 %v1187, %v1226
  %v1243 = vadd.f32 %v1188, %v1227
  %v1244 = vadd.f32 %v1189, %v1228
  %v1245 = vadd.f32 %v1190, %v1229
  %v1246 = vadd.f32 %v1191, %v1230
  %v1247 = vadd.f32 %v1192, %v1231
  %v1248 = vadd.f32 %v1193, %v1232
  %v1249 = vadd.f32 %v1194, %v1233
  %v1250 = vadd.f32 %v1195, %v1234
  %v1251 = vadd.f32 %v1196, %v1235
  %v1252 = vadd.f32 %v1197, %v1236
  %v1253 = vadd.f32 %v1198, %v1237
  %v1254 = vadd.f32 %v1199, %v1238
  %v1255 = vadd.f32 %v1200, %v1239
  %v1256 = vadd.f32 %v1201, %v1240
  %1257 = vrot.lane.b32.xlu0 %v949, 32
  %v1258 = vpop.permute.xlu0 %1257
  %1259 = vrot.lane.b32.xlu0 %v953, 32
  %v1260 = vpop.permute.xlu0 %1259
  %1261 = vrot.lane.b32.xlu0 %v957, 32
  %v1262 = vpop.permute.xlu0 %1261
  %1263 = vrot.lane.b32.xlu0 %v961, 32
  %v1264 = vpop.permute.xlu0 %1263
  %1265 = vrot.lane.b32.xlu0 %v950, 32
  %v1266 = vpop.permute.xlu0 %1265
  %1267 = vrot.lane.b32.xlu0 %v954, 32
  %v1268 = vpop.permute.xlu0 %1267
  %1269 = vrot.lane.b32.xlu0 %v958, 32
  %v1270 = vpop.permute.xlu0 %1269
  %1271 = vrot.lane.b32.xlu0 %v962, 32
  %v1272 = vpop.permute.xlu0 %1271
  %1273 = vrot.lane.b32.xlu0 %v951, 32
  %v1274 = vpop.permute.xlu0 %1273
  %1275 = vrot.lane.b32.xlu0 %v955, 32
  %v1276 = vpop.permute.xlu0 %1275
  %1277 = vrot.lane.b32.xlu0 %v959, 32
  %v1278 = vpop.permute.xlu0 %1277
  %1279 = vrot.lane.b32.xlu0 %v963, 32
  %v1280 = vpop.permute.xlu0 %1279
  %1281 = vrot.lane.b32.xlu0 %v952, 32
  %v1282 = vpop.permute.xlu0 %1281
  %1283 = vrot.lane.b32.xlu0 %v956, 32
  %v1284 = vpop.permute.xlu0 %1283
  %1285 = vrot.lane.b32.xlu0 %v960, 32
  %v1286 = vpop.permute.xlu0 %1285
  %1287 = vrot.lane.b32.xlu0 %v964, 32
  %v1288 = vpop.permute.xlu0 %1287
  %v1289 = vsel %vm126, %v1274, %v1282
  %v1290 = vsel %vm126, %v1276, %v1284
  %v1291 = vsel %vm126, %v1278, %v1286
  %v1292 = vsel %vm126, %v1280, %v1288
  %v1293 = vsel %vm126, %v1266, %v1274
  %v1294 = vsel %vm126, %v1268, %v1276
  %v1295 = vsel %vm126, %v1270, %v1278
  %v1296 = vsel %vm126, %v1272, %v1280
  %v1297 = vsel %vm126, %v1258, %v1266
  %v1298 = vsel %vm126, %v1260, %v1268
  %v1299 = vsel %vm126, %v1262, %v1270
  %v1300 = vsel %vm126, %v1264, %v1272
  %v1301 = vsel %vm126, %v1282, %v1258
  %v1302 = vsel %vm126, %v1284, %v1260
  %v1303 = vsel %vm126, %v1286, %v1262
  %v1304 = vsel %vm126, %v1288, %v1264
  %1305 = vrot.lane.b32.xlu0 %v949, 96
  %v1306 = vpop.permute.xlu0 %1305
  %1307 = vrot.lane.b32.xlu0 %v953, 96
  %v1308 = vpop.permute.xlu0 %1307
  %1309 = vrot.lane.b32.xlu0 %v957, 96
  %v1310 = vpop.permute.xlu0 %1309
  %1311 = vrot.lane.b32.xlu0 %v961, 96
  %v1312 = vpop.permute.xlu0 %1311
  %1313 = vrot.lane.b32.xlu0 %v950, 96
  %v1314 = vpop.permute.xlu0 %1313
  %1315 = vrot.lane.b32.xlu0 %v954, 96
  %v1316 = vpop.permute.xlu0 %1315
  %1317 = vrot.lane.b32.xlu0 %v958, 96
  %v1318 = vpop.permute.xlu0 %1317
  %1319 = vrot.lane.b32.xlu0 %v962, 96
  %v1320 = vpop.permute.xlu0 %1319
  %1321 = vrot.lane.b32.xlu0 %v951, 96
  %v1322 = vpop.permute.xlu0 %1321
  %1323 = vrot.lane.b32.xlu0 %v955, 96
  %v1324 = vpop.permute.xlu0 %1323
  %1325 = vrot.lane.b32.xlu0 %v959, 96
  %v1326 = vpop.permute.xlu0 %1325
  %1327 = vrot.lane.b32.xlu0 %v963, 96
  %v1328 = vpop.permute.xlu0 %1327
  %1329 = vrot.lane.b32.xlu0 %v952, 96
  %v1330 = vpop.permute.xlu0 %1329
  %1331 = vrot.lane.b32.xlu0 %v956, 96
  %v1332 = vpop.permute.xlu0 %1331
  %1333 = vrot.lane.b32.xlu0 %v960, 96
  %v1334 = vpop.permute.xlu0 %1333
  %1335 = vrot.lane.b32.xlu0 %v964, 96
  %v1336 = vpop.permute.xlu0 %1335
  %v1337 = vsel %vm175, %v1322, %v1330
  %v1338 = vsel %vm175, %v1324, %v1332
  %v1339 = vsel %vm175, %v1326, %v1334
  %v1340 = vsel %vm175, %v1328, %v1336
  %v1341 = vsel %vm175, %v1314, %v1322
  %v1342 = vsel %vm175, %v1316, %v1324
  %v1343 = vsel %vm175, %v1318, %v1326
  %v1344 = vsel %vm175, %v1320, %v1328
  %v1345 = vsel %vm175, %v1306, %v1314
  %v1346 = vsel %vm175, %v1308, %v1316
  %v1347 = vsel %vm175, %v1310, %v1318
  %v1348 = vsel %vm175, %v1312, %v1320
  %v1349 = vsel %vm175, %v1330, %v1306
  %v1350 = vsel %vm175, %v1332, %v1308
  %v1351 = vsel %vm175, %v1334, %v1310
  %v1352 = vsel %vm175, %v1336, %v1312
  %s1353 = scalar_lea.vmem %s3, 3
  %v1354 = vld [vmem:[%s1353] ss:$8 sm:$0xf]
  %v1356 = vlaneseq
  %v1357 = vshrl.u32 %v1356, 7
  %v1358 = vsub.s32 0, %v1357
  %v1359 = vrot.slane %v1354, %v1358
  %v1360 = vlaneseq
  %v1361 = vshrl.u32 %v1360, 7
  %v1362 = vsub.s32 1, %v1361
  %v1363 = vrot.slane %v1354, %v1362
  %v1364 = vlaneseq
  %v1365 = vshrl.u32 %v1364, 7
  %v1366 = vsub.s32 2, %v1365
  %v1367 = vrot.slane %v1354, %v1366
  %v1368 = vlaneseq
  %v1369 = vshrl.u32 %v1368, 7
  %v1370 = vsub.s32 3, %v1369
  %v1371 = vrot.slane %v1354, %v1370
  %v1376 = vmul.f32 %v1301, %v1359
  %v1377 = vmul.f32 %v1297, %v1363
  %v1378 = vmul.f32 %v1293, %v1367
  %v1379 = vmul.f32 %v1289, %v1371
  %v1380 = vmul.f32 %v1302, %v1359
  %v1381 = vmul.f32 %v1298, %v1363
  %v1382 = vmul.f32 %v1294, %v1367
  %v1383 = vmul.f32 %v1290, %v1371
  %v1384 = vmul.f32 %v1303, %v1359
  %v1385 = vmul.f32 %v1299, %v1363
  %v1386 = vmul.f32 %v1295, %v1367
  %v1387 = vmul.f32 %v1291, %v1371
  %v1388 = vmul.f32 %v1304, %v1359
  %v1389 = vmul.f32 %v1300, %v1363
  %v1390 = vmul.f32 %v1296, %v1367
  %v1391 = vmul.f32 %v1292, %v1371
  %s1392 = scalar_lea.vmem %s3, 4
  %v1393 = vld [vmem:[%s1392] ss:$8 sm:$0xf]
  %v1395 = vlaneseq
  %v1396 = vshrl.u32 %v1395, 7
  %v1397 = vsub.s32 0, %v1396
  %v1398 = vrot.slane %v1393, %v1397
  %v1399 = vlaneseq
  %v1400 = vshrl.u32 %v1399, 7
  %v1401 = vsub.s32 1, %v1400
  %v1402 = vrot.slane %v1393, %v1401
  %v1403 = vlaneseq
  %v1404 = vshrl.u32 %v1403, 7
  %v1405 = vsub.s32 2, %v1404
  %v1406 = vrot.slane %v1393, %v1405
  %v1407 = vlaneseq
  %v1408 = vshrl.u32 %v1407, 7
  %v1409 = vsub.s32 3, %v1408
  %v1410 = vrot.slane %v1393, %v1409
  %v1415 = vmul.f32 %v949, %v1398
  %v1416 = vmul.f32 %v950, %v1402
  %v1417 = vmul.f32 %v951, %v1406
  %v1418 = vmul.f32 %v952, %v1410
  %v1419 = vmul.f32 %v953, %v1398
  %v1420 = vmul.f32 %v954, %v1402
  %v1421 = vmul.f32 %v955, %v1406
  %v1422 = vmul.f32 %v956, %v1410
  %v1423 = vmul.f32 %v957, %v1398
  %v1424 = vmul.f32 %v958, %v1402
  %v1425 = vmul.f32 %v959, %v1406
  %v1426 = vmul.f32 %v960, %v1410
  %v1427 = vmul.f32 %v961, %v1398
  %v1428 = vmul.f32 %v962, %v1402
  %v1429 = vmul.f32 %v963, %v1406
  %v1430 = vmul.f32 %v964, %v1410
  %v1431 = vadd.f32 %v1376, %v1415
  %v1432 = vadd.f32 %v1377, %v1416
  %v1433 = vadd.f32 %v1378, %v1417
  %v1434 = vadd.f32 %v1379, %v1418
  %v1435 = vadd.f32 %v1380, %v1419
  %v1436 = vadd.f32 %v1381, %v1420
  %v1437 = vadd.f32 %v1382, %v1421
  %v1438 = vadd.f32 %v1383, %v1422
  %v1439 = vadd.f32 %v1384, %v1423
  %v1440 = vadd.f32 %v1385, %v1424
  %v1441 = vadd.f32 %v1386, %v1425
  %v1442 = vadd.f32 %v1387, %v1426
  %v1443 = vadd.f32 %v1388, %v1427
  %v1444 = vadd.f32 %v1389, %v1428
  %v1445 = vadd.f32 %v1390, %v1429
  %v1446 = vadd.f32 %v1391, %v1430
  %s1447 = scalar_lea.vmem %s3, 5
  %v1448 = vld [vmem:[%s1447] ss:$8 sm:$0xf]
  %v1450 = vlaneseq
  %v1451 = vshrl.u32 %v1450, 7
  %v1452 = vsub.s32 0, %v1451
  %v1453 = vrot.slane %v1448, %v1452
  %v1454 = vlaneseq
  %v1455 = vshrl.u32 %v1454, 7
  %v1456 = vsub.s32 1, %v1455
  %v1457 = vrot.slane %v1448, %v1456
  %v1458 = vlaneseq
  %v1459 = vshrl.u32 %v1458, 7
  %v1460 = vsub.s32 2, %v1459
  %v1461 = vrot.slane %v1448, %v1460
  %v1462 = vlaneseq
  %v1463 = vshrl.u32 %v1462, 7
  %v1464 = vsub.s32 3, %v1463
  %v1465 = vrot.slane %v1448, %v1464
  %v1470 = vmul.f32 %v1345, %v1453
  %v1471 = vmul.f32 %v1341, %v1457
  %v1472 = vmul.f32 %v1337, %v1461
  %v1473 = vmul.f32 %v1349, %v1465
  %v1474 = vmul.f32 %v1346, %v1453
  %v1475 = vmul.f32 %v1342, %v1457
  %v1476 = vmul.f32 %v1338, %v1461
  %v1477 = vmul.f32 %v1350, %v1465
  %v1478 = vmul.f32 %v1347, %v1453
  %v1479 = vmul.f32 %v1343, %v1457
  %v1480 = vmul.f32 %v1339, %v1461
  %v1481 = vmul.f32 %v1351, %v1465
  %v1482 = vmul.f32 %v1348, %v1453
  %v1483 = vmul.f32 %v1344, %v1457
  %v1484 = vmul.f32 %v1340, %v1461
  %v1485 = vmul.f32 %v1352, %v1465
  %v1486 = vadd.f32 %v1431, %v1470
  %v1487 = vadd.f32 %v1432, %v1471
  %v1488 = vadd.f32 %v1433, %v1472
  %v1489 = vadd.f32 %v1434, %v1473
  %v1490 = vadd.f32 %v1435, %v1474
  %v1491 = vadd.f32 %v1436, %v1475
  %v1492 = vadd.f32 %v1437, %v1476
  %v1493 = vadd.f32 %v1438, %v1477
  %v1494 = vadd.f32 %v1439, %v1478
  %v1495 = vadd.f32 %v1440, %v1479
  %v1496 = vadd.f32 %v1441, %v1480
  %v1497 = vadd.f32 %v1442, %v1481
  %v1498 = vadd.f32 %v1443, %v1482
  %v1499 = vadd.f32 %v1444, %v1483
  %v1500 = vadd.f32 %v1445, %v1484
  %v1501 = vadd.f32 %v1446, %v1485
  %v1502 = vadd.f32 %v1241, %v1486
  %v1503 = vadd.f32 %v1242, %v1487
  %v1504 = vadd.f32 %v1243, %v1488
  %v1505 = vadd.f32 %v1244, %v1489
  %v1506 = vadd.f32 %v1245, %v1490
  %v1507 = vadd.f32 %v1246, %v1491
  %v1508 = vadd.f32 %v1247, %v1492
  %v1509 = vadd.f32 %v1248, %v1493
  %v1510 = vadd.f32 %v1249, %v1494
  %v1511 = vadd.f32 %v1250, %v1495
  %v1512 = vadd.f32 %v1251, %v1496
  %v1513 = vadd.f32 %v1252, %v1497
  %v1514 = vadd.f32 %v1253, %v1498
  %v1515 = vadd.f32 %v1254, %v1499
  %v1516 = vadd.f32 %v1255, %v1500
  %v1517 = vadd.f32 %v1256, %v1501
  %v1518 = vrot.slane %v949, 1
  %v1519 = vrot.slane %v950, 1
  %v1520 = vrot.slane %v951, 1
  %v1521 = vrot.slane %v952, 1
  %v1522 = vrot.slane %v953, 1
  %v1523 = vrot.slane %v954, 1
  %v1524 = vrot.slane %v955, 1
  %v1525 = vrot.slane %v956, 1
  %v1526 = vrot.slane %v957, 1
  %v1527 = vrot.slane %v958, 1
  %v1528 = vrot.slane %v959, 1
  %v1529 = vrot.slane %v960, 1
  %v1530 = vrot.slane %v961, 1
  %v1531 = vrot.slane %v962, 1
  %v1532 = vrot.slane %v963, 1
  %v1533 = vrot.slane %v964, 1
  %v1534 = vsel %vm617, %v1526, %v1530
  %v1535 = vsel %vm617, %v1527, %v1531
  %v1536 = vsel %vm617, %v1528, %v1532
  %v1537 = vsel %vm617, %v1529, %v1533
  %v1538 = vsel %vm617, %v1522, %v1526
  %v1539 = vsel %vm617, %v1523, %v1527
  %v1540 = vsel %vm617, %v1524, %v1528
  %v1541 = vsel %vm617, %v1525, %v1529
  %v1542 = vsel %vm617, %v1518, %v1522
  %v1543 = vsel %vm617, %v1519, %v1523
  %v1544 = vsel %vm617, %v1520, %v1524
  %v1545 = vsel %vm617, %v1521, %v1525
  %v1546 = vsel %vm617, %v1530, %v1518
  %v1547 = vsel %vm617, %v1531, %v1519
  %v1548 = vsel %vm617, %v1532, %v1520
  %v1549 = vsel %vm617, %v1533, %v1521
  %v1550 = vsel %vm41, %v1542, 0.0
  %v1551 = vsel %vm41, %v1543, 0.0
  %v1552 = vsel %vm41, %v1544, 0.0
  %v1553 = vsel %vm41, %v1545, 0.0
  %v1554 = vsel %vm42, %v1538, 0.0
  %v1555 = vsel %vm42, %v1539, 0.0
  %v1556 = vsel %vm42, %v1540, 0.0
  %v1557 = vsel %vm42, %v1541, 0.0
  %v1558 = vsel %vm41, %v1534, 0.0
  %v1559 = vsel %vm41, %v1535, 0.0
  %v1560 = vsel %vm41, %v1536, 0.0
  %v1561 = vsel %vm41, %v1537, 0.0
  %v1562 = vsel %vm42, %v1546, 0.0
  %v1563 = vsel %vm42, %v1547, 0.0
  %v1564 = vsel %vm42, %v1548, 0.0
  %v1565 = vsel %vm42, %v1549, 0.0
  %1566 = vrot.lane.b32.xlu0 %v1550, 32
  %v1567 = vpop.permute.xlu0 %1566
  %1568 = vrot.lane.b32.xlu0 %v1554, 32
  %v1569 = vpop.permute.xlu0 %1568
  %1570 = vrot.lane.b32.xlu0 %v1558, 32
  %v1571 = vpop.permute.xlu0 %1570
  %1572 = vrot.lane.b32.xlu0 %v1562, 32
  %v1573 = vpop.permute.xlu0 %1572
  %1574 = vrot.lane.b32.xlu0 %v1551, 32
  %v1575 = vpop.permute.xlu0 %1574
  %1576 = vrot.lane.b32.xlu0 %v1555, 32
  %v1577 = vpop.permute.xlu0 %1576
  %1578 = vrot.lane.b32.xlu0 %v1559, 32
  %v1579 = vpop.permute.xlu0 %1578
  %1580 = vrot.lane.b32.xlu0 %v1563, 32
  %v1581 = vpop.permute.xlu0 %1580
  %1582 = vrot.lane.b32.xlu0 %v1552, 32
  %v1583 = vpop.permute.xlu0 %1582
  %1584 = vrot.lane.b32.xlu0 %v1556, 32
  %v1585 = vpop.permute.xlu0 %1584
  %1586 = vrot.lane.b32.xlu0 %v1560, 32
  %v1587 = vpop.permute.xlu0 %1586
  %1588 = vrot.lane.b32.xlu0 %v1564, 32
  %v1589 = vpop.permute.xlu0 %1588
  %1590 = vrot.lane.b32.xlu0 %v1553, 32
  %v1591 = vpop.permute.xlu0 %1590
  %1592 = vrot.lane.b32.xlu0 %v1557, 32
  %v1593 = vpop.permute.xlu0 %1592
  %1594 = vrot.lane.b32.xlu0 %v1561, 32
  %v1595 = vpop.permute.xlu0 %1594
  %1596 = vrot.lane.b32.xlu0 %v1565, 32
  %v1597 = vpop.permute.xlu0 %1596
  %v1598 = vsel %vm126, %v1583, %v1591
  %v1599 = vsel %vm126, %v1585, %v1593
  %v1600 = vsel %vm126, %v1587, %v1595
  %v1601 = vsel %vm126, %v1589, %v1597
  %v1602 = vsel %vm126, %v1575, %v1583
  %v1603 = vsel %vm126, %v1577, %v1585
  %v1604 = vsel %vm126, %v1579, %v1587
  %v1605 = vsel %vm126, %v1581, %v1589
  %v1606 = vsel %vm126, %v1567, %v1575
  %v1607 = vsel %vm126, %v1569, %v1577
  %v1608 = vsel %vm126, %v1571, %v1579
  %v1609 = vsel %vm126, %v1573, %v1581
  %v1610 = vsel %vm126, %v1591, %v1567
  %v1611 = vsel %vm126, %v1593, %v1569
  %v1612 = vsel %vm126, %v1595, %v1571
  %v1613 = vsel %vm126, %v1597, %v1573
  %1614 = vrot.lane.b32.xlu0 %v1550, 96
  %v1615 = vpop.permute.xlu0 %1614
  %1616 = vrot.lane.b32.xlu0 %v1554, 96
  %v1617 = vpop.permute.xlu0 %1616
  %1618 = vrot.lane.b32.xlu0 %v1558, 96
  %v1619 = vpop.permute.xlu0 %1618
  %1620 = vrot.lane.b32.xlu0 %v1562, 96
  %v1621 = vpop.permute.xlu0 %1620
  %1622 = vrot.lane.b32.xlu0 %v1551, 96
  %v1623 = vpop.permute.xlu0 %1622
  %1624 = vrot.lane.b32.xlu0 %v1555, 96
  %v1625 = vpop.permute.xlu0 %1624
  %1626 = vrot.lane.b32.xlu0 %v1559, 96
  %v1627 = vpop.permute.xlu0 %1626
  %1628 = vrot.lane.b32.xlu0 %v1563, 96
  %v1629 = vpop.permute.xlu0 %1628
  %1630 = vrot.lane.b32.xlu0 %v1552, 96
  %v1631 = vpop.permute.xlu0 %1630
  %1632 = vrot.lane.b32.xlu0 %v1556, 96
  %v1633 = vpop.permute.xlu0 %1632
  %1634 = vrot.lane.b32.xlu0 %v1560, 96
  %v1635 = vpop.permute.xlu0 %1634
  %1636 = vrot.lane.b32.xlu0 %v1564, 96
  %v1637 = vpop.permute.xlu0 %1636
  %1638 = vrot.lane.b32.xlu0 %v1553, 96
  %v1639 = vpop.permute.xlu0 %1638
  %1640 = vrot.lane.b32.xlu0 %v1557, 96
  %v1641 = vpop.permute.xlu0 %1640
  %1642 = vrot.lane.b32.xlu0 %v1561, 96
  %v1643 = vpop.permute.xlu0 %1642
  %1644 = vrot.lane.b32.xlu0 %v1565, 96
  %v1645 = vpop.permute.xlu0 %1644
  %v1646 = vsel %vm175, %v1631, %v1639
  %v1647 = vsel %vm175, %v1633, %v1641
  %v1648 = vsel %vm175, %v1635, %v1643
  %v1649 = vsel %vm175, %v1637, %v1645
  %v1650 = vsel %vm175, %v1623, %v1631
  %v1651 = vsel %vm175, %v1625, %v1633
  %v1652 = vsel %vm175, %v1627, %v1635
  %v1653 = vsel %vm175, %v1629, %v1637
  %v1654 = vsel %vm175, %v1615, %v1623
  %v1655 = vsel %vm175, %v1617, %v1625
  %v1656 = vsel %vm175, %v1619, %v1627
  %v1657 = vsel %vm175, %v1621, %v1629
  %v1658 = vsel %vm175, %v1639, %v1615
  %v1659 = vsel %vm175, %v1641, %v1617
  %v1660 = vsel %vm175, %v1643, %v1619
  %v1661 = vsel %vm175, %v1645, %v1621
  %s1662 = scalar_lea.vmem %s3, 6
  %v1663 = vld [vmem:[%s1662] ss:$8 sm:$0xf]
  %v1665 = vlaneseq
  %v1666 = vshrl.u32 %v1665, 7
  %v1667 = vsub.s32 0, %v1666
  %v1668 = vrot.slane %v1663, %v1667
  %v1669 = vlaneseq
  %v1670 = vshrl.u32 %v1669, 7
  %v1671 = vsub.s32 1, %v1670
  %v1672 = vrot.slane %v1663, %v1671
  %v1673 = vlaneseq
  %v1674 = vshrl.u32 %v1673, 7
  %v1675 = vsub.s32 2, %v1674
  %v1676 = vrot.slane %v1663, %v1675
  %v1677 = vlaneseq
  %v1678 = vshrl.u32 %v1677, 7
  %v1679 = vsub.s32 3, %v1678
  %v1680 = vrot.slane %v1663, %v1679
  %v1685 = vmul.f32 %v1610, %v1668
  %v1686 = vmul.f32 %v1606, %v1672
  %v1687 = vmul.f32 %v1602, %v1676
  %v1688 = vmul.f32 %v1598, %v1680
  %v1689 = vmul.f32 %v1611, %v1668
  %v1690 = vmul.f32 %v1607, %v1672
  %v1691 = vmul.f32 %v1603, %v1676
  %v1692 = vmul.f32 %v1599, %v1680
  %v1693 = vmul.f32 %v1612, %v1668
  %v1694 = vmul.f32 %v1608, %v1672
  %v1695 = vmul.f32 %v1604, %v1676
  %v1696 = vmul.f32 %v1600, %v1680
  %v1697 = vmul.f32 %v1613, %v1668
  %v1698 = vmul.f32 %v1609, %v1672
  %v1699 = vmul.f32 %v1605, %v1676
  %v1700 = vmul.f32 %v1601, %v1680
  %s1701 = scalar_lea.vmem %s3, 7
  %v1702 = vld [vmem:[%s1701] ss:$8 sm:$0xf]
  %v1704 = vlaneseq
  %v1705 = vshrl.u32 %v1704, 7
  %v1706 = vsub.s32 0, %v1705
  %v1707 = vrot.slane %v1702, %v1706
  %v1708 = vlaneseq
  %v1709 = vshrl.u32 %v1708, 7
  %v1710 = vsub.s32 1, %v1709
  %v1711 = vrot.slane %v1702, %v1710
  %v1712 = vlaneseq
  %v1713 = vshrl.u32 %v1712, 7
  %v1714 = vsub.s32 2, %v1713
  %v1715 = vrot.slane %v1702, %v1714
  %v1716 = vlaneseq
  %v1717 = vshrl.u32 %v1716, 7
  %v1718 = vsub.s32 3, %v1717
  %v1719 = vrot.slane %v1702, %v1718
  %v1724 = vmul.f32 %v1550, %v1707
  %v1725 = vmul.f32 %v1551, %v1711
  %v1726 = vmul.f32 %v1552, %v1715
  %v1727 = vmul.f32 %v1553, %v1719
  %v1728 = vmul.f32 %v1554, %v1707
  %v1729 = vmul.f32 %v1555, %v1711
  %v1730 = vmul.f32 %v1556, %v1715
  %v1731 = vmul.f32 %v1557, %v1719
  %v1732 = vmul.f32 %v1558, %v1707
  %v1733 = vmul.f32 %v1559, %v1711
  %v1734 = vmul.f32 %v1560, %v1715
  %v1735 = vmul.f32 %v1561, %v1719
  %v1736 = vmul.f32 %v1562, %v1707
  %v1737 = vmul.f32 %v1563, %v1711
  %v1738 = vmul.f32 %v1564, %v1715
  %v1739 = vmul.f32 %v1565, %v1719
  %v1740 = vadd.f32 %v1685, %v1724
  %v1741 = vadd.f32 %v1686, %v1725
  %v1742 = vadd.f32 %v1687, %v1726
  %v1743 = vadd.f32 %v1688, %v1727
  %v1744 = vadd.f32 %v1689, %v1728
  %v1745 = vadd.f32 %v1690, %v1729
  %v1746 = vadd.f32 %v1691, %v1730
  %v1747 = vadd.f32 %v1692, %v1731
  %v1748 = vadd.f32 %v1693, %v1732
  %v1749 = vadd.f32 %v1694, %v1733
  %v1750 = vadd.f32 %v1695, %v1734
  %v1751 = vadd.f32 %v1696, %v1735
  %v1752 = vadd.f32 %v1697, %v1736
  %v1753 = vadd.f32 %v1698, %v1737
  %v1754 = vadd.f32 %v1699, %v1738
  %v1755 = vadd.f32 %v1700, %v1739
  %s1756 = scalar_lea.vmem %s3, 32
  %v1757 = vld [vmem:[%s1756] ss:$8 sm:$0xf]
  %v1759 = vlaneseq
  %v1760 = vshrl.u32 %v1759, 7
  %v1761 = vsub.s32 0, %v1760
  %v1762 = vrot.slane %v1757, %v1761
  %v1763 = vlaneseq
  %v1764 = vshrl.u32 %v1763, 7
  %v1765 = vsub.s32 1, %v1764
  %v1766 = vrot.slane %v1757, %v1765
  %v1767 = vlaneseq
  %v1768 = vshrl.u32 %v1767, 7
  %v1769 = vsub.s32 2, %v1768
  %v1770 = vrot.slane %v1757, %v1769
  %v1771 = vlaneseq
  %v1772 = vshrl.u32 %v1771, 7
  %v1773 = vsub.s32 3, %v1772
  %v1774 = vrot.slane %v1757, %v1773
  %v1779 = vmul.f32 %v1654, %v1762
  %v1780 = vmul.f32 %v1650, %v1766
  %v1781 = vmul.f32 %v1646, %v1770
  %v1782 = vmul.f32 %v1658, %v1774
  %v1783 = vmul.f32 %v1655, %v1762
  %v1784 = vmul.f32 %v1651, %v1766
  %v1785 = vmul.f32 %v1647, %v1770
  %v1786 = vmul.f32 %v1659, %v1774
  %v1787 = vmul.f32 %v1656, %v1762
  %v1788 = vmul.f32 %v1652, %v1766
  %v1789 = vmul.f32 %v1648, %v1770
  %v1790 = vmul.f32 %v1660, %v1774
  %v1791 = vmul.f32 %v1657, %v1762
  %v1792 = vmul.f32 %v1653, %v1766
  %v1793 = vmul.f32 %v1649, %v1770
  %v1794 = vmul.f32 %v1661, %v1774
  %v1795 = vadd.f32 %v1740, %v1779
  %v1796 = vadd.f32 %v1741, %v1780
  %v1797 = vadd.f32 %v1742, %v1781
  %v1798 = vadd.f32 %v1743, %v1782
  %v1799 = vadd.f32 %v1744, %v1783
  %v1800 = vadd.f32 %v1745, %v1784
  %v1801 = vadd.f32 %v1746, %v1785
  %v1802 = vadd.f32 %v1747, %v1786
  %v1803 = vadd.f32 %v1748, %v1787
  %v1804 = vadd.f32 %v1749, %v1788
  %v1805 = vadd.f32 %v1750, %v1789
  %v1806 = vadd.f32 %v1751, %v1790
  %v1807 = vadd.f32 %v1752, %v1791
  %v1808 = vadd.f32 %v1753, %v1792
  %v1809 = vadd.f32 %v1754, %v1793
  %v1810 = vadd.f32 %v1755, %v1794
  %v1811 = vadd.f32 %v1502, %v1795
  %v1812 = vadd.f32 %v1503, %v1796
  %v1813 = vadd.f32 %v1504, %v1797
  %v1814 = vadd.f32 %v1505, %v1798
  %v1815 = vadd.f32 %v1506, %v1799
  %v1816 = vadd.f32 %v1507, %v1800
  %v1817 = vadd.f32 %v1508, %v1801
  %v1818 = vadd.f32 %v1509, %v1802
  %v1819 = vadd.f32 %v1510, %v1803
  %v1820 = vadd.f32 %v1511, %v1804
  %v1821 = vadd.f32 %v1512, %v1805
  %v1822 = vadd.f32 %v1513, %v1806
  %v1823 = vadd.f32 %v1514, %v1807
  %v1824 = vadd.f32 %v1515, %v1808
  %v1825 = vadd.f32 %v1516, %v1809
  %v1826 = vadd.f32 %v1517, %v1810
  %v1827 = vld [vmem:[%s4] sm:$0xf]
  %v1829 = vlaneseq
  %v1830 = vshrl.u32 %v1829, 7
  %v1831 = vsub.s32 0, %v1830
  %v1832 = vrot.slane %v1827, %v1831
  %v1833 = vlaneseq
  %v1834 = vshrl.u32 %v1833, 7
  %v1835 = vsub.s32 1, %v1834
  %v1836 = vrot.slane %v1827, %v1835
  %v1837 = vlaneseq
  %v1838 = vshrl.u32 %v1837, 7
  %v1839 = vsub.s32 2, %v1838
  %v1840 = vrot.slane %v1827, %v1839
  %v1841 = vlaneseq
  %v1842 = vshrl.u32 %v1841, 7
  %v1843 = vsub.s32 3, %v1842
  %v1844 = vrot.slane %v1827, %v1843
  %v1849 = vadd.f32 %v1811, %v1832
  %v1850 = vadd.f32 %v1812, %v1836
  %v1851 = vadd.f32 %v1813, %v1840
  %v1852 = vadd.f32 %v1814, %v1844
  %v1853 = vadd.f32 %v1815, %v1832
  %v1854 = vadd.f32 %v1816, %v1836
  %v1855 = vadd.f32 %v1817, %v1840
  %v1856 = vadd.f32 %v1818, %v1844
  %v1857 = vadd.f32 %v1819, %v1832
  %v1858 = vadd.f32 %v1820, %v1836
  %v1859 = vadd.f32 %v1821, %v1840
  %v1860 = vadd.f32 %v1822, %v1844
  %v1861 = vadd.f32 %v1823, %v1832
  %v1862 = vadd.f32 %v1824, %v1836
  %v1863 = vadd.f32 %v1825, %v1840
  %v1864 = vadd.f32 %v1826, %v1844
  %v1865 = vadd.f32 %v1849, %v20
  %v1866 = vadd.f32 %v1850, %v21
  %v1867 = vadd.f32 %v1851, %v22
  %v1868 = vadd.f32 %v1852, %v23
  %v1869 = vadd.f32 %v1853, %v24
  %v1870 = vadd.f32 %v1854, %v25
  %v1871 = vadd.f32 %v1855, %v26
  %v1872 = vadd.f32 %v1856, %v27
  %v1873 = vadd.f32 %v1857, %v28
  %v1874 = vadd.f32 %v1858, %v29
  %v1875 = vadd.f32 %v1859, %v30
  %v1876 = vadd.f32 %v1860, %v31
  %v1877 = vadd.f32 %v1861, %v32
  %v1878 = vadd.f32 %v1862, %v33
  %v1879 = vadd.f32 %v1863, %v34
  %v1880 = vadd.f32 %v1864, %v35
  %v1881 = vmax.f32 %v1865, 0.0
  %v1882 = vmax.f32 %v1866, 0.0
  %v1883 = vmax.f32 %v1867, 0.0
  %v1884 = vmax.f32 %v1868, 0.0
  %v1885 = vmax.f32 %v1869, 0.0
  %v1886 = vmax.f32 %v1870, 0.0
  %v1887 = vmax.f32 %v1871, 0.0
  %v1888 = vmax.f32 %v1872, 0.0
  %v1889 = vmax.f32 %v1873, 0.0
  %v1890 = vmax.f32 %v1874, 0.0
  %v1891 = vmax.f32 %v1875, 0.0
  %v1892 = vmax.f32 %v1876, 0.0
  %v1893 = vmax.f32 %v1877, 0.0
  %v1894 = vmax.f32 %v1878, 0.0
  %v1895 = vmax.f32 %v1879, 0.0
  %v1896 = vmax.f32 %v1880, 0.0
  %1897 = vst [vmem:[%s5] sm:$0xff] %v1881
  %1898 = vst [vmem:[%s5 + $0x8] sm:$0xff] %v1882
  %1899 = vst [vmem:[%s5 + $0x10] sm:$0xff] %v1883
  %1900 = vst [vmem:[%s5 + $0x18] sm:$0xff] %v1884
  %1901 = vst [vmem:[%s5 + $0x20] sm:$0xff] %v1885
  %1902 = vst [vmem:[%s5 + $0x28] sm:$0xff] %v1886
  %1903 = vst [vmem:[%s5 + $0x30] sm:$0xff] %v1887
  %1904 = vst [vmem:[%s5 + $0x38] sm:$0xff] %v1888
  %1905 = vst [vmem:[%s5 + $0x40] sm:$0xff] %v1889
  %1906 = vst [vmem:[%s5 + $0x48] sm:$0xff] %v1890
  %1907 = vst [vmem:[%s5 + $0x50] sm:$0xff] %v1891
  %1908 = vst [vmem:[%s5 + $0x58] sm:$0xff] %v1892
  %1909 = vst [vmem:[%s5 + $0x60] sm:$0xff] %v1893
  %1910 = vst [vmem:[%s5 + $0x68] sm:$0xff] %v1894
  %1911 = vst [vmem:[%s5 + $0x70] sm:$0xff] %v1895
  %1912 = vst [vmem:[%s5 + $0x78] sm:$0xff] %v1896
  // Predicated region
  $region22: #{basic_block_forward.1} parent=0 // pred_check
    _
  $region23: #{basic_block_forward.1} parent=0 // pred_check_branch
    %1914 = sbr.rel (0) target = $region25
  $region24: #{basic_block_forward.1} parent=0 // pred_region
    _
  $region25: #{basic_block_forward.1} parent=0 // pred_fallthru
    _
  // Predicated region
  $region26: #{basic_block_forward.1} parent=0 // pred_check
    _
  $region27: #{basic_block_forward.1} parent=0 // pred_check_branch
    %1916 = sbr.rel (0) target = $region29
  $region28: #{basic_block_forward.1} parent=0 // pred_region
    _
  $region29: #{basic_block_forward.1} parent=0 // pred_fallthru
    _

</llo_original>
